<compile_context>
chip_gen: v7x
topology: tpu7x:2x2x1
jax: 0.10.0
libtpu: 0.0.40
codegen_flags: <defaults>
</compile_context>

<pallas_src>
import jax
import jax.numpy as jnp
from jax import lax
from jax.experimental import pallas as pl
from jax.experimental.pallas import tpu as pltpu

# ----------------------------- config ---------------------------------------
B = 8            # per-view batch
C, HW = 4, 16    # image channels / spatial
F_IN = C * HW * HW          # 1024
DIM = 128        # feature dim ("dim=256" scaled down)
MLP = 256        # hidden dim ("mlp_dim=4096" scaled down)
T = 0.07
SCALE = DIM ** (-0.5)
BN_EPS = 1e-5

TK = 256                     # streamed chunk of the input-feature (K) axis
KSTEPS = F_IN // TK          # 4 grid steps


# ----------------------------- in-kernel helpers ----------------------------
def _bf16(x):
    return x.astype(jnp.bfloat16)


def _mm(a, b):
    """bf16 MXU matmul, f32 accumulation."""
    return jnp.dot(_bf16(a), _bf16(b), preferred_element_type=jnp.float32)


def _bn_per_view(y):
    """Training-mode BatchNorm1d (biased variance, eps=1e-5), stats per view.

    The original module calls predictor(v1) and predictor(v2) separately, so
    batch statistics are computed over rows [0:B] and [B:2B] independently.
    Implemented as a (2, B, N) reshape + reduce over axis=1 (no axis-0
    concatenate, fewer XLU reduce passes).  All math stays f32.
    """
    n = y.shape[-1]
    y3 = y.reshape(2, B, n)
    mean = jnp.mean(y3, axis=1, keepdims=True)
    var = jnp.mean(jnp.square(y3 - mean), axis=1, keepdims=True)
    return ((y3 - mean) * lax.rsqrt(var + BN_EPS)).reshape(2 * B, n)


def _softmax_attn(q, k, v):
    """softmax(q @ k.T * scale, axis=-1) @ v  (f32 softmax, bf16 MXU)."""
    s = lax.dot_general(_bf16(q), _bf16(k), (((1,), (1,)), ((), ())),
                        preferred_element_type=jnp.float32) * SCALE
    s = s - jnp.max(s, axis=-1, keepdims=True)
    p = jnp.exp(s)
    p = p * pl.reciprocal(jnp.sum(p, axis=-1, keepdims=True), approx=True)
    return jnp.dot(_bf16(p), _bf16(v), preferred_element_type=jnp.float32)


def _contrastive_loss(q, k, temp):
    """F.normalize rows; sim = k @ q.T / T; CE(sim, arange) * 2T."""
    qn = q * lax.rsqrt(jnp.maximum(jnp.sum(q * q, axis=1, keepdims=True), 1e-24))
    kn = k * lax.rsqrt(jnp.maximum(jnp.sum(k * k, axis=1, keepdims=True), 1e-24))
    sim = lax.dot_general(kn, qn, (((1,), (1,)), ((), ())),
                          preferred_element_type=jnp.float32) / temp
    mx = jnp.max(sim, axis=-1, keepdims=True)
    lse = jnp.log(jnp.sum(jnp.exp(sim - mx), axis=-1, keepdims=True)) + mx
    row = lax.broadcasted_iota(jnp.int32, sim.shape, 0)
    col = lax.broadcasted_iota(jnp.int32, sim.shape, 1)
    diag = jnp.sum(jnp.where(row == col, sim, 0.0), axis=-1, keepdims=True)
    n = sim.shape[0]
    return jnp.sum(lse - diag) / n * (2.0 * temp)


# ----------------------------- fused, streamed kernel -----------------------
def _moco_kernel(m_ref, x1_ref, x2_ref, w1_ref, mw1_ref, w2_ref, mw2_ref,
                 pw1_ref, g1_ref, b1_ref, pw2_ref,
                 loss_ref, mw1_out, mw2_out,
                 h_acc, hm_acc):
    step = pl.program_id(0)
    last = pl.num_programs(0) - 1
    m = m_ref[0]

    @pl.when(step == 0)
    def _init():
        h_acc[...] = jnp.zeros_like(h_acc)
        hm_acc[...] = jnp.zeros_like(hm_acc)

    # ---- momentum EMA on this w1 chunk; chunk writeback is pipelined -------
    mw1_chunk = mw1_ref[...] * m + w1_ref[...] * (1.0 - m)
    mw1_out[...] = mw1_chunk

    # ---- stack the two views in VMEM, accumulate layer-1 matmuls -----------
    x = jnp.concatenate([x1_ref[...], x2_ref[...]], axis=0)      # (2B, TK)
    # TODO(synk): fusing the base/momentum dots via an N-concat of the weight
    # chunks would halve MXU weight-push sequences, but the per-chunk VMEM
    # concat copy costs more than it saves at these shapes; kept as two dots.
    h_acc[...] += _mm(x, w1_ref[...])                            # base enc L1
    hm_acc[...] += _mm(x, mw1_chunk)                             # mom enc L1

    # ---- everything else is tiny: run once after the last chunk ------------
    @pl.when(step == last)
    def _tail():
        # momentum EMA of the (small) second-layer weights
        mw2_new = mw2_ref[...] * m + w2_ref[...] * (1.0 - m)
        mw2_out[...] = mw2_new

        # base encoder:  Linear -> ReLU -> Linear   (views stacked)
        v = _mm(jnp.maximum(h_acc[...], 0.0), w2_ref[...])       # (2B, DIM)
        # momentum encoder with the freshly-updated weights (still in VMEM)
        k = _mm(jnp.maximum(hm_acc[...], 0.0), mw2_new)          # (2B, DIM)

        # predictor: Lin(no bias)->BN->ReLU->Lin(no bias)->BN(affine=False)
        h = _bn_per_view(_mm(v, pw1_ref[...])) * g1_ref[...] + b1_ref[...]
        h = jnp.maximum(h, 0.0)
        q = _bn_per_view(_mm(h, pw2_ref[...]))                   # (2B, DIM)

        # cross attention + contrastive loss
        q1, q2 = q[:B], q[B:]
        k1, k2 = k[:B], k[B:]
        v1, v2 = v[:B], v[B:]
        c1 = _softmax_attn(q2, k1, v1)
        c2 = _softmax_attn(q1, k2, v2)
        loss_ref[0] = _contrastive_loss(c1, c2, T)


# ----------------------------- wrapper --------------------------------------
def moco_forward_pallas(base_params, mom_params, pred_params, x1f, x2f, m):
    m_arr = jnp.reshape(m, (1,)).astype(jnp.float32)
    smem = pltpu.MemorySpace.SMEM

    grid_spec = pltpu.PrefetchScalarGridSpec(
        num_scalar_prefetch=0,
        grid=(KSTEPS,),
        in_specs=[
            pl.BlockSpec((1,), lambda k: (0,), memory_space=smem),   # m
            pl.BlockSpec((B, TK), lambda k: (0, k)),                 # x1 (f32)
            pl.BlockSpec((B, TK), lambda k: (0, k)),                 # x2 (f32)
            pl.BlockSpec((TK, MLP), lambda k: (k, 0)),               # w1 (f32)
            pl.BlockSpec((TK, MLP), lambda k: (k, 0)),               # mw1 (f32)
            pl.BlockSpec((MLP, DIM), lambda k: (0, 0)),              # w2 (f32)
            pl.BlockSpec((MLP, DIM), lambda k: (0, 0)),              # mw2 (f32)
            pl.BlockSpec((DIM, MLP), lambda k: (0, 0)),              # pw1 (bf16)
            pl.BlockSpec((1, MLP), lambda k: (0, 0)),                # g1
            pl.BlockSpec((1, MLP), lambda k: (0, 0)),                # b1
            pl.BlockSpec((MLP, DIM), lambda k: (0, 0)),              # pw2 (bf16)
        ],
        out_specs=(
            pl.BlockSpec((1,), lambda k: (0,), memory_space=smem),   # loss
            pl.BlockSpec((TK, MLP), lambda k: (k, 0)),               # mw1_new
            pl.BlockSpec((MLP, DIM), lambda k: (0, 0)),              # mw2_new
        ),
        scratch_shapes=[
            pltpu.VMEM((2 * B, MLP), jnp.float32),                   # h_acc
            pltpu.VMEM((2 * B, MLP), jnp.float32),                   # hm_acc
        ],
    )

    out_shape = (
        jax.ShapeDtypeStruct((1,), jnp.float32),           # loss
        jax.ShapeDtypeStruct((F_IN, MLP), jnp.float32),    # updated mom w1
        jax.ShapeDtypeStruct((MLP, DIM), jnp.float32),     # updated mom w2
    )

    loss, mw1_new, mw2_new = pl.pallas_call(
        _moco_kernel,
        out_shape=out_shape,
        grid_spec=grid_spec,
        compiler_params=pltpu.CompilerParams(
            dimension_semantics=("arbitrary",)),
        cost_estimate=pl.CostEstimate(
            flops=22_000_000, transcendentals=2_048,
            bytes_accessed=3_740_000),
    )(m_arr, x1f, x2f,
      base_params["w1"], mom_params["w1"],
      base_params["w2"], mom_params["w2"],
      pred_params["w1"], pred_params["g1"], pred_params["b1"],
      pred_params["w2"])
    return loss[0], {"w1": mw1_new, "w2": mw2_new}


# ----------------------------- model glue -----------------------------------
def init_params(key):
    ks = jax.random.split(key, 4)

    def lin(k, fan_in, fan_out, dtype=jnp.float32):
        w = jax.random.normal(k, (fan_in, fan_out), jnp.float32) * (fan_in ** -0.5)
        return w.astype(dtype)

    base = {"w1": lin(ks[0], F_IN, MLP), "w2": lin(ks[1], MLP, DIM)}
    mom = jax.tree_util.tree_map(lambda p: p.copy(), base)  # copy_ of base
    pred = {
        # Predictor weights only ever feed bf16 MXU matmuls -> store in bf16
        # (halves their HBM bytes).  EMA masters (base/mom) stay f32.
        "w1": lin(ks[2], DIM, MLP, jnp.bfloat16),
        "g1": jnp.ones((1, MLP), jnp.float32),
        "b1": jnp.zeros((1, MLP), jnp.float32),
        "w2": lin(ks[3], MLP, DIM, jnp.bfloat16),
        # last BN has affine=False -> handled at compile time (no g2/b2)
    }
    return base, mom, pred


@jax.jit
def moco_forward(base_params, mom_params, pred_params, x1, x2, m, mask_ratio):
    del mask_ratio  # TODO(synk): ViT-style patch masking is encoder-specific; not modeled here.
    b = x1.shape[0]
    # Flatten only (free for contiguous NCHW); the two views are stacked
    # INSIDE the kernel, so there is no XLA-side concatenate / extra HBM trip.
    x1f = x1.reshape(b, -1)
    x2f = x2.reshape(b, -1)
    # TODO(synk): dist_nn.all_gather is the identity on a single device.
    return moco_forward_pallas(base_params, mom_params, pred_params, x1f, x2f, m)


# ----------------------------- main ------------------------------------------
if __name__ == "__main__":
    key = jax.random.PRNGKey(0)
    kp, kx1, kx2 = jax.random.split(key, 3)
    base_p, mom_p, pred_p = init_params(kp)

    x1 = jax.random.normal(kx1, (B, C, HW, HW), jnp.float32)  # NCHW like PyTorch
    x2 = jax.random.normal(kx2, (B, C, HW, HW), jnp.float32)
    m = jnp.float32(0.99)
    mask_ratio = jnp.float32(0.75)

    loss, new_mom = moco_forward(base_p, mom_p, pred_p, x1, x2, m, mask_ratio)
    jax.block_until_ready((loss, new_mom))

    assert loss.shape == () and jnp.isfinite(loss)
    # in-kernel EMA must match the reference momentum-update formula (f32)
    ref_mw1 = mom_p["w1"] * m + base_p["w1"] * (1.0 - m)
    ref_mw2 = mom_p["w2"] * m + base_p["w2"] * (1.0 - m)
    assert jnp.allclose(new_mom["w1"], ref_mw1, rtol=1e-5, atol=1e-5)
    assert jnp.allclose(new_mom["w2"], ref_mw2, rtol=1e-5, atol=1e-5)
    print("KERNEL_OK")
</pallas_src>

<mosaic_0001>
module attributes {stable_mosaic.version = 11 : i64} {
  func.func @_moco_kernel(%arg0: i32, %arg1: memref<1xf32, #tpu.memory_space<smem>>, %arg2: memref<8x256xf32, #tpu.memory_space<vmem>>, %arg3: memref<8x256xf32, #tpu.memory_space<vmem>>, %arg4: memref<256x256xf32, #tpu.memory_space<vmem>>, %arg5: memref<256x256xf32, #tpu.memory_space<vmem>>, %arg6: memref<256x128xf32, #tpu.memory_space<vmem>>, %arg7: memref<256x128xf32, #tpu.memory_space<vmem>>, %arg8: memref<128x256xbf16, #tpu.memory_space<vmem>>, %arg9: memref<1x256xf32, #tpu.memory_space<vmem>>, %arg10: memref<1x256xf32, #tpu.memory_space<vmem>>, %arg11: memref<256x128xbf16, #tpu.memory_space<vmem>>, %arg12: memref<1xf32, #tpu.memory_space<smem>>, %arg13: memref<256x256xf32, #tpu.memory_space<vmem>>, %arg14: memref<256x128xf32, #tpu.memory_space<vmem>>, %arg15: memref<16x256xf32, #tpu.memory_space<vmem>>, %arg16: memref<16x256xf32, #tpu.memory_space<vmem>>) attributes {dimension_semantics = [#tpu.dimension_semantics<arbitrary>], iteration_bounds = array<i64: 4>, scalar_prefetch = 0 : i64, scratch_operands = 2 : i64, tpu.core_type = #tpu.core_type<tc>, window_params = [{transform_indices = @transform_0, window_bounds = array<i64: 1>}, {transform_indices = @transform_1, window_bounds = array<i64: 8, 256>}, {transform_indices = @transform_2, window_bounds = array<i64: 8, 256>}, {transform_indices = @transform_3, window_bounds = array<i64: 256, 256>}, {transform_indices = @transform_4, window_bounds = array<i64: 256, 256>}, {pipeline_mode = #tpu.pipeline_mode<synchronous>, transform_indices = @transform_5, window_bounds = array<i64: 256, 128>}, {pipeline_mode = #tpu.pipeline_mode<synchronous>, transform_indices = @transform_6, window_bounds = array<i64: 256, 128>}, {pipeline_mode = #tpu.pipeline_mode<synchronous>, transform_indices = @transform_7, window_bounds = array<i64: 128, 256>}, {pipeline_mode = #tpu.pipeline_mode<synchronous>, transform_indices = @transform_8, window_bounds = array<i64: 1, 256>}, {pipeline_mode = #tpu.pipeline_mode<synchronous>, transform_indices = @transform_9, window_bounds = array<i64: 1, 256>}, {pipeline_mode = #tpu.pipeline_mode<synchronous>, transform_indices = @transform_10, window_bounds = array<i64: 256, 128>}, {transform_indices = @transform_11, window_bounds = array<i64: 1>}, {transform_indices = @transform_12, window_bounds = array<i64: 256, 256>}, {pipeline_mode = #tpu.pipeline_mode<synchronous>, transform_indices = @transform_13, window_bounds = array<i64: 256, 128>}]} {
    %c0 = arith.constant 0 : index
    %0 = memref.load %arg1[%c0] : memref<1xf32, #tpu.memory_space<smem>>
    %c0_i32 = arith.constant 0 : i32
    %1 = arith.cmpi eq, %arg0, %c0_i32 : i32
    %2 = arith.extui %1 : i1 to i32
    %c0_i32_0 = arith.constant 0 : i32
    %3 = arith.cmpi ne, %2, %c0_i32_0 : i32
    scf.if %3 {
      %cst_24 = arith.constant 0.000000e+00 : f32
      %32 = vector.broadcast %cst_24 : f32 to vector<16x256xf32>
      %c0_25 = arith.constant 0 : index
      %c0_26 = arith.constant 0 : index
      %33 = vector.load %arg15[%c0_25, %c0_26] : memref<16x256xf32, #tpu.memory_space<vmem>>, vector<16x256xf32>
      tpu.vector_store %arg15[%c0_25, %c0_26], %32 {strides = array<i32>} : memref<16x256xf32, #tpu.memory_space<vmem>>, vector<16x256xf32>,
      %cst_27 = arith.constant 0.000000e+00 : f32
      %34 = vector.broadcast %cst_27 : f32 to vector<16x256xf32>
      %c0_28 = arith.constant 0 : index
      %c0_29 = arith.constant 0 : index
      %35 = vector.load %arg16[%c0_28, %c0_29] : memref<16x256xf32, #tpu.memory_space<vmem>>, vector<16x256xf32>
      tpu.vector_store %arg16[%c0_28, %c0_29], %34 {strides = array<i32>} : memref<16x256xf32, #tpu.memory_space<vmem>>, vector<16x256xf32>,
    } else {
    }
    %c0_1 = arith.constant 0 : index
    %c0_2 = arith.constant 0 : index
    %4 = vector.load %arg5[%c0_1, %c0_2] : memref<256x256xf32, #tpu.memory_space<vmem>>, vector<256x256xf32>
    %5 = vector.broadcast %0 : f32 to vector<256x256xf32>
    %6 = arith.mulf %4, %5 : vector<256x256xf32>
    %c0_3 = arith.constant 0 : index
    %c0_4 = arith.constant 0 : index
    %7 = vector.load %arg4[%c0_3, %c0_4] : memref<256x256xf32, #tpu.memory_space<vmem>>, vector<256x256xf32>
    %cst = arith.constant 1.000000e+00 : f32
    %8 = arith.subf %cst, %0 : f32
    %9 = vector.broadcast %8 : f32 to vector<256x256xf32>
    %10 = arith.mulf %7, %9 : vector<256x256xf32>
    %11 = arith.addf %6, %10 : vector<256x256xf32>
    %c0_5 = arith.constant 0 : index
    %c0_6 = arith.constant 0 : index
    %12 = vector.load %arg13[%c0_5, %c0_6] : memref<256x256xf32, #tpu.memory_space<vmem>>, vector<256x256xf32>
    tpu.vector_store %arg13[%c0_5, %c0_6], %11 {strides = array<i32>} : memref<256x256xf32, #tpu.memory_space<vmem>>, vector<256x256xf32>,
    %c0_7 = arith.constant 0 : index
    %c0_8 = arith.constant 0 : index
    %13 = vector.load %arg2[%c0_7, %c0_8] : memref<8x256xf32, #tpu.memory_space<vmem>>, vector<8x256xf32>
    %c0_9 = arith.constant 0 : index
    %c0_10 = arith.constant 0 : index
    %14 = vector.load %arg3[%c0_9, %c0_10] : memref<8x256xf32, #tpu.memory_space<vmem>>, vector<8x256xf32>
    %15 = tpu.concatenate %13, %14 in 0 : vector<8x256xf32>, vector<8x256xf32> -> vector<16x256xf32>
    %c0_11 = arith.constant 0 : index
    %c0_12 = arith.constant 0 : index
    %16 = vector.load %arg15[%c0_11, %c0_12] : memref<16x256xf32, #tpu.memory_space<vmem>>, vector<16x256xf32>
    %c0_13 = arith.constant 0 : index
    %c0_14 = arith.constant 0 : index
    %17 = vector.load %arg4[%c0_13, %c0_14] : memref<256x256xf32, #tpu.memory_space<vmem>>, vector<256x256xf32>
    %18 = arith.truncf %15 : vector<16x256xf32> to vector<16x256xbf16>
    %19 = arith.truncf %17 : vector<256x256xf32> to vector<256x256xbf16>
    %cst_15 = arith.constant dense<0.000000e+00> : vector<16x256xf32>
    %20 = tpu.matmul %18, %19, %cst_15 {dimension_numbers = #tpu.dot_dimension_numbers<[1], [0], [0], [1], [0, 0, 1, 1], [], []>} : vector<16x256xbf16>, vector<256x256xbf16>, vector<16x256xf32> -> vector<16x256xf32>
    %21 = arith.addf %16, %20 : vector<16x256xf32>
    %c0_16 = arith.constant 0 : index
    %c0_17 = arith.constant 0 : index
    %22 = vector.load %arg15[%c0_16, %c0_17] : memref<16x256xf32, #tpu.memory_space<vmem>>, vector<16x256xf32>
    tpu.vector_store %arg15[%c0_16, %c0_17], %21 {strides = array<i32>} : memref<16x256xf32, #tpu.memory_space<vmem>>, vector<16x256xf32>,
    %c0_18 = arith.constant 0 : index
    %c0_19 = arith.constant 0 : index
    %23 = vector.load %arg16[%c0_18, %c0_19] : memref<16x256xf32, #tpu.memory_space<vmem>>, vector<16x256xf32>
    %24 = arith.truncf %15 : vector<16x256xf32> to vector<16x256xbf16>
    %25 = arith.truncf %11 : vector<256x256xf32> to vector<256x256xbf16>
    %cst_20 = arith.constant dense<0.000000e+00> : vector<16x256xf32>
    %26 = tpu.matmul %24, %25, %cst_20 {dimension_numbers = #tpu.dot_dimension_numbers<[1], [0], [0], [1], [0, 0, 1, 1], [], []>} : vector<16x256xbf16>, vector<256x256xbf16>, vector<16x256xf32> -> vector<16x256xf32>
    %27 = arith.addf %23, %26 : vector<16x256xf32>
    %c0_21 = arith.constant 0 : index
    %c0_22 = arith.constant 0 : index
    %28 = vector.load %arg16[%c0_21, %c0_22] : memref<16x256xf32, #tpu.memory_space<vmem>>, vector<16x256xf32>
    tpu.vector_store %arg16[%c0_21, %c0_22], %27 {strides = array<i32>} : memref<16x256xf32, #tpu.memory_space<vmem>>, vector<16x256xf32>,
    %c3_i32 = arith.constant 3 : i32
    %29 = arith.cmpi eq, %arg0, %c3_i32 : i32
    %30 = arith.extui %29 : i1 to i32
    %c0_i32_23 = arith.constant 0 : i32
    %31 = arith.cmpi ne, %30, %c0_i32_23 : i32
    scf.if %31 {
      %c0_24 = arith.constant 0 : index
      %c0_25 = arith.constant 0 : index
      %32 = vector.load %arg7[%c0_24, %c0_25] : memref<256x128xf32, #tpu.memory_space<vmem>>, vector<256x128xf32>
      %33 = vector.broadcast %0 : f32 to vector<256x128xf32>
      %34 = arith.mulf %32, %33 : vector<256x128xf32>
      %c0_26 = arith.constant 0 : index
      %c0_27 = arith.constant 0 : index
      %35 = vector.load %arg6[%c0_26, %c0_27] : memref<256x128xf32, #tpu.memory_space<vmem>>, vector<256x128xf32>
      %cst_28 = arith.constant 1.000000e+00 : f32
      %36 = arith.subf %cst_28, %0 : f32
      %37 = vector.broadcast %36 : f32 to vector<256x128xf32>
      %38 = arith.mulf %35, %37 : vector<256x128xf32>
      %39 = arith.addf %34, %38 : vector<256x128xf32>
      %c0_29 = arith.constant 0 : index
      %c0_30 = arith.constant 0 : index
      %40 = vector.load %arg14[%c0_29, %c0_30] : memref<256x128xf32, #tpu.memory_space<vmem>>, vector<256x128xf32>
      tpu.vector_store %arg14[%c0_29, %c0_30], %39 {strides = array<i32>} : memref<256x128xf32, #tpu.memory_space<vmem>>, vector<256x128xf32>,
      %c0_31 = arith.constant 0 : index
      %c0_32 = arith.constant 0 : index
      %41 = vector.load %arg15[%c0_31, %c0_32] : memref<16x256xf32, #tpu.memory_space<vmem>>, vector<16x256xf32>
      %cst_33 = arith.constant 0.000000e+00 : f32
      %42 = vector.broadcast %cst_33 : f32 to vector<16x256xf32>
      %43 = arith.maximumf %41, %42 : vector<16x256xf32>
      %c0_34 = arith.constant 0 : index
      %c0_35 = arith.constant 0 : index
      %44 = vector.load %arg6[%c0_34, %c0_35] : memref<256x128xf32, #tpu.memory_space<vmem>>, vector<256x128xf32>
      %45 = arith.truncf %43 : vector<16x256xf32> to vector<16x256xbf16>
      %46 = arith.truncf %44 : vector<256x128xf32> to vector<256x128xbf16>
      %cst_36 = arith.constant dense<0.000000e+00> : vector<16x128xf32>
      %47 = tpu.matmul %45, %46, %cst_36 {dimension_numbers = #tpu.dot_dimension_numbers<[1], [0], [0], [1], [0, 0, 1, 1], [], []>} : vector<16x256xbf16>, vector<256x128xbf16>, vector<16x128xf32> -> vector<16x128xf32>
      %c0_37 = arith.constant 0 : index
      %c0_38 = arith.constant 0 : index
      %48 = vector.load %arg16[%c0_37, %c0_38] : memref<16x256xf32, #tpu.memory_space<vmem>>, vector<16x256xf32>
      %cst_39 = arith.constant 0.000000e+00 : f32
      %49 = vector.broadcast %cst_39 : f32 to vector<16x256xf32>
      %50 = arith.maximumf %48, %49 : vector<16x256xf32>
      %51 = arith.truncf %50 : vector<16x256xf32> to vector<16x256xbf16>
      %52 = arith.truncf %39 : vector<256x128xf32> to vector<256x128xbf16>
      %cst_40 = arith.constant dense<0.000000e+00> : vector<16x128xf32>
      %53 = tpu.matmul %51, %52, %cst_40 {dimension_numbers = #tpu.dot_dimension_numbers<[1], [0], [0], [1], [0, 0, 1, 1], [], []>} : vector<16x256xbf16>, vector<256x128xbf16>, vector<16x128xf32> -> vector<16x128xf32>
      %c0_41 = arith.constant 0 : index
      %c0_42 = arith.constant 0 : index
      %54 = vector.load %arg8[%c0_41, %c0_42] : memref<128x256xbf16, #tpu.memory_space<vmem>>, vector<128x256xbf16>
      %55 = arith.truncf %47 : vector<16x128xf32> to vector<16x128xbf16>
      %cst_43 = arith.constant dense<0.000000e+00> : vector<16x256xf32>
      %56 = tpu.matmul %55, %54, %cst_43 {dimension_numbers = #tpu.dot_dimension_numbers<[1], [0], [0], [1], [0, 0, 1, 1], [], []>} : vector<16x128xbf16>, vector<128x256xbf16>, vector<16x256xf32> -> vector<16x256xf32>
      %57 = vector.shape_cast %56 : vector<16x256xf32> to vector<2x8x256xf32>
      %cst_44 = arith.constant dense<0.000000e+00> : vector<2x256xf32>
      %58 = vector.multi_reduction <add>, %57, %cst_44 [1] : vector<2x8x256xf32> to vector<2x256xf32>
      %59 = vector.shape_cast %58 : vector<2x256xf32> to vector<2x1x256xf32>
      %cst_45 = arith.constant 8.000000e+00 : f32
      %60 = vector.broadcast %cst_45 : f32 to vector<2x1x256xf32>
      %61 = arith.divf %59, %60 : vector<2x1x256xf32>
      %62 = vector.broadcast %61 : vector<2x1x256xf32> to vector<2x8x256xf32>
      %63 = arith.subf %57, %62 : vector<2x8x256xf32>
      %64 = arith.mulf %63, %63 : vector<2x8x256xf32>
      %cst_46 = arith.constant dense<0.000000e+00> : vector<2x256xf32>
      %65 = vector.multi_reduction <add>, %64, %cst_46 [1] : vector<2x8x256xf32> to vector<2x256xf32>
      %66 = vector.shape_cast %65 : vector<2x256xf32> to vector<2x1x256xf32>
      %cst_47 = arith.constant 8.000000e+00 : f32
      %67 = vector.broadcast %cst_47 : f32 to vector<2x1x256xf32>
      %68 = arith.divf %66, %67 : vector<2x1x256xf32>
      %69 = vector.broadcast %61 : vector<2x1x256xf32> to vector<2x8x256xf32>
      %70 = arith.subf %57, %69 : vector<2x8x256xf32>
      %cst_48 = arith.constant 9.99999974E-6 : f32
      %71 = vector.broadcast %cst_48 : f32 to vector<2x1x256xf32>
      %72 = arith.addf %68, %71 : vector<2x1x256xf32>
      %73 = math.rsqrt %72 : vector<2x1x256xf32>
      %74 = vector.broadcast %73 : vector<2x1x256xf32> to vector<2x8x256xf32>
      %75 = arith.mulf %70, %74 : vector<2x8x256xf32>
      %76 = vector.shape_cast %75 : vector<2x8x256xf32> to vector<16x256xf32>
      %c0_49 = arith.constant 0 : index
      %c0_50 = arith.constant 0 : index
      %77 = vector.load %arg9[%c0_49, %c0_50] : memref<1x256xf32, #tpu.memory_space<vmem>>, vector<1x256xf32>
      %78 = vector.broadcast %77 : vector<1x256xf32> to vector<16x256xf32>
      %79 = arith.mulf %76, %78 : vector<16x256xf32>
      %c0_51 = arith.constant 0 : index
      %c0_52 = arith.constant 0 : index
      %80 = vector.load %arg10[%c0_51, %c0_52] : memref<1x256xf32, #tpu.memory_space<vmem>>, vector<1x256xf32>
      %81 = vector.broadcast %80 : vector<1x256xf32> to vector<16x256xf32>
      %82 = arith.addf %79, %81 : vector<16x256xf32>
      %cst_53 = arith.constant 0.000000e+00 : f32
      %83 = vector.broadcast %cst_53 : f32 to vector<16x256xf32>
      %84 = arith.maximumf %82, %83 : vector<16x256xf32>
      %c0_54 = arith.constant 0 : index
      %c0_55 = arith.constant 0 : index
      %85 = vector.load %arg11[%c0_54, %c0_55] : memref<256x128xbf16, #tpu.memory_space<vmem>>, vector<256x128xbf16>
      %86 = arith.truncf %84 : vector<16x256xf32> to vector<16x256xbf16>
      %cst_56 = arith.constant dense<0.000000e+00> : vector<16x128xf32>
      %87 = tpu.matmul %86, %85, %cst_56 {dimension_numbers = #tpu.dot_dimension_numbers<[1], [0], [0], [1], [0, 0, 1, 1], [], []>} : vector<16x256xbf16>, vector<256x128xbf16>, vector<16x128xf32> -> vector<16x128xf32>
      %88 = vector.shape_cast %87 : vector<16x128xf32> to vector<2x8x128xf32>
      %cst_57 = arith.constant dense<0.000000e+00> : vector<2x128xf32>
      %89 = vector.multi_reduction <add>, %88, %cst_57 [1] : vector<2x8x128xf32> to vector<2x128xf32>
      %90 = vector.shape_cast %89 : vector<2x128xf32> to vector<2x1x128xf32>
      %cst_58 = arith.constant 8.000000e+00 : f32
      %91 = vector.broadcast %cst_58 : f32 to vector<2x1x128xf32>
      %92 = arith.divf %90, %91 : vector<2x1x128xf32>
      %93 = vector.broadcast %92 : vector<2x1x128xf32> to vector<2x8x128xf32>
      %94 = arith.subf %88, %93 : vector<2x8x128xf32>
      %95 = arith.mulf %94, %94 : vector<2x8x128xf32>
      %cst_59 = arith.constant dense<0.000000e+00> : vector<2x128xf32>
      %96 = vector.multi_reduction <add>, %95, %cst_59 [1] : vector<2x8x128xf32> to vector<2x128xf32>
      %97 = vector.shape_cast %96 : vector<2x128xf32> to vector<2x1x128xf32>
      %cst_60 = arith.constant 8.000000e+00 : f32
      %98 = vector.broadcast %cst_60 : f32 to vector<2x1x128xf32>
      %99 = arith.divf %97, %98 : vector<2x1x128xf32>
      %100 = vector.broadcast %92 : vector<2x1x128xf32> to vector<2x8x128xf32>
      %101 = arith.subf %88, %100 : vector<2x8x128xf32>
      %cst_61 = arith.constant 9.99999974E-6 : f32
      %102 = vector.broadcast %cst_61 : f32 to vector<2x1x128xf32>
      %103 = arith.addf %99, %102 : vector<2x1x128xf32>
      %104 = math.rsqrt %103 : vector<2x1x128xf32>
      %105 = vector.broadcast %104 : vector<2x1x128xf32> to vector<2x8x128xf32>
      %106 = arith.mulf %101, %105 : vector<2x8x128xf32>
      %107 = vector.shape_cast %106 : vector<2x8x128xf32> to vector<16x128xf32>
      %108 = vector.extract_strided_slice %107 {offsets = [0, 0], sizes = [8, 128], strides = [1, 1]} : vector<16x128xf32> to vector<8x128xf32>
      %109 = vector.extract_strided_slice %107 {offsets = [8, 0], sizes = [8, 128], strides = [1, 1]} : vector<16x128xf32> to vector<8x128xf32>
      %110 = vector.extract_strided_slice %53 {offsets = [0, 0], sizes = [8, 128], strides = [1, 1]} : vector<16x128xf32> to vector<8x128xf32>
      %111 = vector.extract_strided_slice %53 {offsets = [8, 0], sizes = [8, 128], strides = [1, 1]} : vector<16x128xf32> to vector<8x128xf32>
      %112 = vector.extract_strided_slice %47 {offsets = [0, 0], sizes = [8, 128], strides = [1, 1]} : vector<16x128xf32> to vector<8x128xf32>
      %113 = vector.extract_strided_slice %47 {offsets = [8, 0], sizes = [8, 128], strides = [1, 1]} : vector<16x128xf32> to vector<8x128xf32>
      %114 = arith.truncf %109 : vector<8x128xf32> to vector<8x128xbf16>
      %115 = arith.truncf %110 : vector<8x128xf32> to vector<8x128xbf16>
      %cst_62 = arith.constant dense<0.000000e+00> : vector<8x8xf32>
      %116 = tpu.matmul %114, %115, %cst_62 {dimension_numbers = #tpu.dot_dimension_numbers<[1], [1], [0], [0], [0, 0, 1, 0], [], []>} : vector<8x128xbf16>, vector<8x128xbf16>, vector<8x8xf32> -> vector<8x8xf32>
      %cst_63 = arith.constant 0.0883883461 : f32
      %117 = vector.broadcast %cst_63 : f32 to vector<8x8xf32>
      %118 = arith.mulf %116, %117 : vector<8x8xf32>
      %cst_64 = arith.constant dense<0xFF800000> : vector<8xf32>
      %119 = vector.multi_reduction <maximumf>, %118, %cst_64 [1] : vector<8x8xf32> to vector<8xf32>
      %120 = vector.shape_cast %119 : vector<8xf32> to vector<8x1xf32>
      %121 = vector.broadcast %120 : vector<8x1xf32> to vector<8x8xf32>
      %122 = arith.subf %118, %121 : vector<8x8xf32>
      %123 = math.exp %122 : vector<8x8xf32>
      %cst_65 = arith.constant dense<0.000000e+00> : vector<8xf32>
      %124 = vector.multi_reduction <add>, %123, %cst_65 [1] : vector<8x8xf32> to vector<8xf32>
      %125 = vector.shape_cast %124 : vector<8xf32> to vector<8x1xf32>
      %126 = tpu.reciprocal %125 {approx = true} : vector<8x1xf32> -> vector<8x1xf32>
      %127 = vector.broadcast %126 : vector<8x1xf32> to vector<8x8xf32>
      %128 = arith.mulf %123, %127 : vector<8x8xf32>
      %129 = arith.truncf %128 : vector<8x8xf32> to vector<8x8xbf16>
      %130 = arith.truncf %112 : vector<8x128xf32> to vector<8x128xbf16>
      %cst_66 = arith.constant dense<0.000000e+00> : vector<8x128xf32>
      %131 = tpu.matmul %129, %130, %cst_66 {dimension_numbers = #tpu.dot_dimension_numbers<[1], [0], [0], [1], [0, 0, 1, 1], [], []>} : vector<8x8xbf16>, vector<8x128xbf16>, vector<8x128xf32> -> vector<8x128xf32>
      %132 = arith.truncf %108 : vector<8x128xf32> to vector<8x128xbf16>
      %133 = arith.truncf %111 : vector<8x128xf32> to vector<8x128xbf16>
      %cst_67 = arith.constant dense<0.000000e+00> : vector<8x8xf32>
      %134 = tpu.matmul %132, %133, %cst_67 {dimension_numbers = #tpu.dot_dimension_numbers<[1], [1], [0], [0], [0, 0, 1, 0], [], []>} : vector<8x128xbf16>, vector<8x128xbf16>, vector<8x8xf32> -> vector<8x8xf32>
      %cst_68 = arith.constant 0.0883883461 : f32
      %135 = vector.broadcast %cst_68 : f32 to vector<8x8xf32>
      %136 = arith.mulf %134, %135 : vector<8x8xf32>
      %cst_69 = arith.constant dense<0xFF800000> : vector<8xf32>
      %137 = vector.multi_reduction <maximumf>, %136, %cst_69 [1] : vector<8x8xf32> to vector<8xf32>
      %138 = vector.shape_cast %137 : vector<8xf32> to vector<8x1xf32>
      %139 = vector.broadcast %138 : vector<8x1xf32> to vector<8x8xf32>
      %140 = arith.subf %136, %139 : vector<8x8xf32>
      %141 = math.exp %140 : vector<8x8xf32>
      %cst_70 = arith.constant dense<0.000000e+00> : vector<8xf32>
      %142 = vector.multi_reduction <add>, %141, %cst_70 [1] : vector<8x8xf32> to vector<8xf32>
      %143 = vector.shape_cast %142 : vector<8xf32> to vector<8x1xf32>
      %144 = tpu.reciprocal %143 {approx = true} : vector<8x1xf32> -> vector<8x1xf32>
      %145 = vector.broadcast %144 : vector<8x1xf32> to vector<8x8xf32>
      %146 = arith.mulf %141, %145 : vector<8x8xf32>
      %147 = arith.truncf %146 : vector<8x8xf32> to vector<8x8xbf16>
      %148 = arith.truncf %113 : vector<8x128xf32> to vector<8x128xbf16>
      %cst_71 = arith.constant dense<0.000000e+00> : vector<8x128xf32>
      %149 = tpu.matmul %147, %148, %cst_71 {dimension_numbers = #tpu.dot_dimension_numbers<[1], [0], [0], [1], [0, 0, 1, 1], [], []>} : vector<8x8xbf16>, vector<8x128xbf16>, vector<8x128xf32> -> vector<8x128xf32>
      %150 = arith.mulf %131, %131 : vector<8x128xf32>
      %cst_72 = arith.constant dense<0.000000e+00> : vector<8xf32>
      %151 = vector.multi_reduction <add>, %150, %cst_72 [1] : vector<8x128xf32> to vector<8xf32>
      %152 = vector.shape_cast %151 : vector<8xf32> to vector<8x1xf32>
      %cst_73 = arith.constant 1.000000e-24 : f32
      %153 = vector.broadcast %cst_73 : f32 to vector<8x1xf32>
      %154 = arith.maximumf %152, %153 : vector<8x1xf32>
      %155 = math.rsqrt %154 : vector<8x1xf32>
      %156 = vector.broadcast %155 : vector<8x1xf32> to vector<8x128xf32>
      %157 = arith.mulf %131, %156 : vector<8x128xf32>
      %158 = arith.mulf %149, %149 : vector<8x128xf32>
      %cst_74 = arith.constant dense<0.000000e+00> : vector<8xf32>
      %159 = vector.multi_reduction <add>, %158, %cst_74 [1] : vector<8x128xf32> to vector<8xf32>
      %160 = vector.shape_cast %159 : vector<8xf32> to vector<8x1xf32>
      %cst_75 = arith.constant 1.000000e-24 : f32
      %161 = vector.broadcast %cst_75 : f32 to vector<8x1xf32>
      %162 = arith.maximumf %160, %161 : vector<8x1xf32>
      %163 = math.rsqrt %162 : vector<8x1xf32>
      %164 = vector.broadcast %163 : vector<8x1xf32> to vector<8x128xf32>
      %165 = arith.mulf %149, %164 : vector<8x128xf32>
      %cst_76 = arith.constant dense<0.000000e+00> : vector<8x8xf32>
      %166 = tpu.matmul %165, %157, %cst_76 {dimension_numbers = #tpu.dot_dimension_numbers<[1], [1], [0], [0], [0, 0, 1, 0], [], []>} : vector<8x128xf32>, vector<8x128xf32>, vector<8x8xf32> -> vector<8x8xf32>
      %cst_77 = arith.constant 7.000000e-02 : f32
      %167 = vector.broadcast %cst_77 : f32 to vector<8x8xf32>
      %168 = arith.divf %166, %167 : vector<8x8xf32>
      %cst_78 = arith.constant dense<0xFF800000> : vector<8xf32>
      %169 = vector.multi_reduction <maximumf>, %168, %cst_78 [1] : vector<8x8xf32> to vector<8xf32>
      %170 = vector.shape_cast %169 : vector<8xf32> to vector<8x1xf32>
      %171 = vector.broadcast %170 : vector<8x1xf32> to vector<8x8xf32>
      %172 = arith.subf %168, %171 : vector<8x8xf32>
      %173 = math.exp %172 : vector<8x8xf32>
      %cst_79 = arith.constant dense<0.000000e+00> : vector<8xf32>
      %174 = vector.multi_reduction <add>, %173, %cst_79 [1] : vector<8x8xf32> to vector<8xf32>
      %175 = vector.shape_cast %174 : vector<8xf32> to vector<8x1xf32>
      %176 = math.log %175 : vector<8x1xf32>
      %177 = arith.addf %176, %170 : vector<8x1xf32>
      %178 = tpu.iota {dimensions = array<i32: 0>} : vector<8x8xi32>
      %179 = tpu.iota {dimensions = array<i32: 1>} : vector<8x8xi32>
      %180 = arith.cmpi eq, %178, %179 : vector<8x8xi32>
      %cst_80 = arith.constant 0.000000e+00 : f32
      %181 = vector.broadcast %cst_80 : f32 to vector<8x8xf32>
      %182 = arith.select %180, %168, %181 : vector<8x8xi1>, vector<8x8xf32>
      %cst_81 = arith.constant dense<0.000000e+00> : vector<8xf32>
      %183 = vector.multi_reduction <add>, %182, %cst_81 [1] : vector<8x8xf32> to vector<8xf32>
      %184 = vector.shape_cast %183 : vector<8xf32> to vector<8x1xf32>
      %185 = arith.subf %177, %184 : vector<8x1xf32>
      %186 = vector.shape_cast %185 : vector<8x1xf32> to vector<1x8x1xf32>
      %cst_82 = arith.constant dense<0.000000e+00> : vector<1xf32>
      %187 = vector.multi_reduction <add>, %186, %cst_82 [1, 2] : vector<1x8x1xf32> to vector<1xf32>
      %188 = vector.shape_cast %187 : vector<1xf32> to vector<1x1x1xf32>
      %189 = vector.extract %188[0, 0, 0] : f32 from vector<1x1x1xf32>
      %cst_83 = arith.constant 8.000000e+00 : f32
      %190 = arith.divf %189, %cst_83 : f32
      %cst_84 = arith.constant 1.400000e-01 : f32
      %191 = arith.mulf %190, %cst_84 : f32
      %c0_85 = arith.constant 0 : index
      %192 = memref.load %arg12[%c0_85] : memref<1xf32, #tpu.memory_space<smem>>
      memref.store %191, %arg12[%c0_85] : memref<1xf32, #tpu.memory_space<smem>>
    } else {
    }
    return
  }
  func.func @transform_0(%arg0: i32) -> i32 {
    %c0_i32 = arith.constant 0 : i32
    %c0_i32_0 = arith.constant 0 : i32
    return %c0_i32 : i32
  }
  func.func @transform_1(%arg0: i32) -> (i32, i32) {
    %c0_i32 = arith.constant 0 : i32
    %c0_i32_0 = arith.constant 0 : i32
    return %c0_i32, %arg0 : i32, i32
  }
  func.func @transform_2(%arg0: i32) -> (i32, i32) {
    %c0_i32 = arith.constant 0 : i32
    %c0_i32_0 = arith.constant 0 : i32
    return %c0_i32, %arg0 : i32, i32
  }
  func.func @transform_3(%arg0: i32) -> (i32, i32) {
    %c0_i32 = arith.constant 0 : i32
    %c0_i32_0 = arith.constant 0 : i32
    return %arg0, %c0_i32 : i32, i32
  }
  func.func @transform_4(%arg0: i32) -> (i32, i32) {
    %c0_i32 = arith.constant 0 : i32
    %c0_i32_0 = arith.constant 0 : i32
    return %arg0, %c0_i32 : i32, i32
  }
  func.func @transform_5(%arg0: i32) -> (i32, i32) {
    %c0_i32 = arith.constant 0 : i32
    %c0_i32_0 = arith.constant 0 : i32
    %c0_i32_1 = arith.constant 0 : i32
    return %c0_i32, %c0_i32_0 : i32, i32
  }
  func.func @transform_6(%arg0: i32) -> (i32, i32) {
    %c0_i32 = arith.constant 0 : i32
    %c0_i32_0 = arith.constant 0 : i32
    %c0_i32_1 = arith.constant 0 : i32
    return %c0_i32, %c0_i32_0 : i32, i32
  }
  func.func @transform_7(%arg0: i32) -> (i32, i32) {
    %c0_i32 = arith.constant 0 : i32
    %c0_i32_0 = arith.constant 0 : i32
    %c0_i32_1 = arith.constant 0 : i32
    return %c0_i32, %c0_i32_0 : i32, i32
  }
  func.func @transform_8(%arg0: i32) -> (i32, i32) {
    %c0_i32 = arith.constant 0 : i32
    %c0_i32_0 = arith.constant 0 : i32
    %c0_i32_1 = arith.constant 0 : i32
    return %c0_i32, %c0_i32_0 : i32, i32
  }
  func.func @transform_9(%arg0: i32) -> (i32, i32) {
    %c0_i32 = arith.constant 0 : i32
    %c0_i32_0 = arith.constant 0 : i32
    %c0_i32_1 = arith.constant 0 : i32
    return %c0_i32, %c0_i32_0 : i32, i32
  }
  func.func @transform_10(%arg0: i32) -> (i32, i32) {
    %c0_i32 = arith.constant 0 : i32
    %c0_i32_0 = arith.constant 0 : i32
    %c0_i32_1 = arith.constant 0 : i32
    return %c0_i32, %c0_i32_0 : i32, i32
  }
  func.func @transform_11(%arg0: i32) -> i32 {
    %c0_i32 = arith.constant 0 : i32
    %c0_i32_0 = arith.constant 0 : i32
    return %c0_i32 : i32
  }
  func.func @transform_12(%arg0: i32) -> (i32, i32) {
    %c0_i32 = arith.constant 0 : i32
    %c0_i32_0 = arith.constant 0 : i32
    return %arg0, %c0_i32 : i32, i32
  }
  func.func @transform_13(%arg0: i32) -> (i32, i32) {
    %c0_i32 = arith.constant 0 : i32
    %c0_i32_0 = arith.constant 0 : i32
    %c0_i32_1 = arith.constant 0 : i32
    return %c0_i32, %c0_i32_0 : i32, i32
  }
}

</mosaic_0001>

<llo_original>
// kernel: moco_forward.1
$region0: #{moco_forward.1}
  #allocation0 [shape = 'u32[]', space=smem, size = 0x4, offset = 0x4, fixed_abs, tag = 'smem constant byte address 0x4 - core index']
  #allocation1 [shape = 'u32[144,128]{1,0:T(1,128)}', space=vmem, size = 0x12000, scoped, tag = 'internal scratch']
  #allocation2 [shape = 'f32[16,256]{1,0:T(8,128)}', space=vmem, size = 0x4000, scoped, tag = 'scratch operand']
  #allocation3 [shape = 'f32[16,256]{1,0:T(8,128)}', space=vmem, size = 0x4000, scoped, tag = 'scratch operand']
  #allocation4 [shape = 'f32[1]{0:T(128)S(6)}', space=smem, size = 0x200, scoped, tag = 'scoped memory for moco_forward.1']
  %s0 = inlined_call_operand.<no memory space> [shape: f32[1], index: 0, kind: input, shape index: {}]
  %s1 = inlined_call_operand.vmem [shape: f32[8,1024], index: 1, kind: input, shape index: {}]
  %s2 = inlined_call_operand.vmem [shape: f32[8,1024], index: 2, kind: input, shape index: {}]
  %s3 = inlined_call_operand.hbm [shape: f32[1024,256], index: 3, kind: input, shape index: {}]
  %s4 = inlined_call_operand.hbm [shape: f32[1024,256], index: 4, kind: input, shape index: {}]
  %s5 = inlined_call_operand.vmem [shape: f32[256,128], index: 5, kind: input, shape index: {}]
  %s6 = inlined_call_operand.vmem [shape: f32[256,128], index: 6, kind: input, shape index: {}]
  %s7 = inlined_call_operand.vmem [shape: bf16[128,256], index: 7, kind: input, shape index: {}]
  %s8 = inlined_call_operand.vmem [shape: f32[1,256], index: 8, kind: input, shape index: {}]
  %s9 = inlined_call_operand.vmem [shape: f32[1,256], index: 9, kind: input, shape index: {}]
  %s10 = inlined_call_operand.hbm [shape: bf16[256,128], index: 10, kind: input, shape index: {}]
  %s11 = inlined_call_operand.hbm [shape: f32[1], index: 11, kind: output, shape index: {0}]
  %s12 = inlined_call_operand.hbm [shape: f32[1024,256], index: 12, kind: output, shape index: {1}]
  %s13 = inlined_call_operand.hbm [shape: f32[256,128], index: 13, kind: output, shape index: {2}]
  %14 = xla_tuple %s11, %s12, %s13
  %s15 = sld [smem:[#allocation0]]
  $region113: #{moco_forward.1} parent=0
    _
  %s17 = ssub.s32 1, %s15
  %s18 = scalar_select 0, %s17, %s15
  %19 = sst [smem:[#allocation4]] %s0
  $region1: #{moco_forward.1} parent=0
    #allocation5 [shape = 'u8[524288]{0}', space=vmem, size = 0x80000, scoped, tag = 'input window, operand 3']
    #allocation6 [shape = 's32[2]{0}', space=sflag, size = 0x8, scoped, tag = 'scoped memory for moco_forward.1']
    #allocation7 [shape = 's32[2]{0}', space=sflag, size = 0x8, scoped, tag = 'scoped memory for moco_forward.1']
    #allocation8 [shape = 's32[2]{0}', space=sflag, size = 0x8, scoped, tag = 'scoped memory for moco_forward.1']
    #allocation9 [shape = 'u8[524288]{0}', space=vmem, size = 0x80000, scoped, tag = 'input window, operand 4']
    #allocation10 [shape = 's32[2]{0}', space=sflag, size = 0x8, scoped, tag = 'scoped memory for moco_forward.1']
    #allocation11 [shape = 'u8[65536]{0}', space=vmem, size = 0x10000, scoped, tag = 'input window, operand 10, single buffered']
    #allocation12 [shape = 'u8[512]{0}', space=smem, size = 0x200, scoped, tag = 'output window, operand 0, single buffered']
    #allocation13 [shape = 'u8[524288]{0}', space=vmem, size = 0x80000, scoped, tag = 'output window, operand 1']
    #allocation14 [shape = 'u8[131072]{0}', space=vmem, size = 0x20000, scoped, tag = 'output window, operand 2, single buffered']
    #allocation15 [shape = 's32[1]{0}', space=sflag, size = 0x4, scoped, tag = 'scoped memory for moco_forward.1']
    %20 = vsyncpa [#allocation6], 0
    %s21 = scalar_lea.sflag [#allocation6], 1
    %22 = vsyncpa %s21, 0
    %23 = vsyncpa [#allocation10], 0
    %s24 = scalar_lea.sflag [#allocation10], 1
    %25 = vsyncpa %s24, 0
    %26 = vsyncpa [#allocation8], 0
    %27 = vsyncpa [#allocation7], 0
    %s28 = scalar_lea.sflag [#allocation7], 1
    %29 = vsyncpa %s28, 0
    %30 = vsyncpa [#allocation15], 0
    loop: start=0, step=1, limit=6
    $region2: #{moco_forward.1} parent=1 // loop_pre_header
      _
    $region3: #{moco_forward.1} parent=1 // loop_header
      %s32 = sphi 0, %s36
      %p33 = scmp.ge.s32.totalorder %s32, 6
      %s40 = sphi 0, %s40
      %s42 = sphi 0, %s40
      %s43 = sphi 0, %s42
      %s57 = sphi 0, %s43
      %s63 = sphi 0, %s65
      %s66 = sphi 0, %s63
      %s67 = sphi 0, %s66
      %s83 = sphi 0, %s67
      %s89 = sphi 0, %s91
      %s92 = sphi 0, %s89
      %s93 = sphi 0, %s92
      %s109 = sphi 0, %s93
      %s115 = sphi 0, %s117
      %s118 = sphi 0, %s115
      %s119 = sphi 0, %s118
      %s135 = sphi 0, %s119
      %s141 = sphi 0, %s143
      %s144 = sphi 0, %s141
      %s145 = sphi 0, %s144
      %s161 = sphi 0, %s145
      %s165 = sphi 0, %s165
      %s167 = sphi 0, %s165
      %s168 = sphi 0, %s167
      %s182 = sphi 0, %s168
      %s186 = sphi 0, %s186
      %s188 = sphi 0, %s186
      %s189 = sphi 0, %s188
      %s203 = sphi 0, %s189
      %s207 = sphi 0, %s207
      %s209 = sphi 0, %s207
      %s210 = sphi 0, %s209
      %s224 = sphi 0, %s210
      %s228 = sphi 0, %s228
      %s230 = sphi 0, %s228
      %s231 = sphi 0, %s230
      %s245 = sphi 0, %s231
      %s249 = sphi 0, %s249
      %s251 = sphi 0, %s249
      %s252 = sphi 0, %s251
      %s266 = sphi 0, %s252
      %s270 = sphi 0, %s270
      %s272 = sphi 0, %s270
      %s273 = sphi 0, %s272
      %s287 = sphi 0, %s273
      %s291 = sphi 0, %s291
      %s293 = sphi 0, %s291
      %s294 = sphi 0, %s293
      %s308 = sphi 0, %s294
      %s314 = sphi 0, %s316
      %s317 = sphi 0, %s314
      %s318 = sphi 0, %s317
      %s334 = sphi 0, %s318
      %s338 = sphi 0, %s338
      %s340 = sphi 0, %s338
      %s341 = sphi 0, %s340
      %s355 = sphi 0, %s341
    $region4: #{moco_forward.1} parent=1 // loop_header_branch
      %35 = sbr.rel (%p33) target = $region8
    $region5: #{moco_forward.1} parent=1 // loop_body
      %s37 = ssub.s32 %s32, 1
      %s38 = ssub.s32 %s32, 2
      %s39 = sadd.s32 %s32, 1
      %s41 = sadd.s32 %s40, 1
      %p44 = scmp.eq.s32.totalorder %s32, 3
      %p45 = scmp.ne.s32.totalorder %s40, %s42
      %p46 = scmp.eq.s32.totalorder %s32, 0
      %p47 = por %p45, %p46
      %p48 = scmp.ne.s32.totalorder %s40, %s42
      %p49 = scmp.eq.s32.totalorder %s37, 3
      %p50 = por %p48, %p49
      %p51 = scmp.ne.s32.totalorder %s42, %s43
      %p52 = scmp.eq.s32.totalorder %s37, 0
      %p53 = por %p51, %p52
      %p54 = scmp.ne.s32.totalorder %s42, %s43
      %p55 = scmp.eq.s32.totalorder %s38, 3
      %p56 = por %p54, %p55
      %p58 = scmp.ne.s32.totalorder %s43, %s57
      %p59 = scmp.eq.s32.totalorder %s38, 0
      %p60 = por %p58, %p59
      %s61 = ssub.s32 %s32, %s39
      %p62 = scmp.eq.s32.totalorder %s61, 0
      %s64 = sadd.s32 %s63, 1
      %s65 = scalar_select %p62, %s63, %s64
      %p68 = pneg %p62
      %p69 = scmp.eq.s32.totalorder %s32, 3
      %p70 = por %p68, %p69
      %p71 = scmp.ne.s32.totalorder %s63, %s66
      %p72 = scmp.eq.s32.totalorder %s32, 0
      %p73 = por %p71, %p72
      %p74 = scmp.ne.s32.totalorder %s63, %s66
      %p75 = scmp.eq.s32.totalorder %s37, 3
      %p76 = por %p74, %p75
      %p77 = scmp.ne.s32.totalorder %s66, %s67
      %p78 = scmp.eq.s32.totalorder %s37, 0
      %p79 = por %p77, %p78
      %p80 = scmp.ne.s32.totalorder %s66, %s67
      %p81 = scmp.eq.s32.totalorder %s38, 3
      %p82 = por %p80, %p81
      %p84 = scmp.ne.s32.totalorder %s67, %s83
      %p85 = scmp.eq.s32.totalorder %s38, 0
      %p86 = por %p84, %p85
      %s87 = ssub.s32 %s32, %s39
      %p88 = scmp.eq.s32.totalorder %s87, 0
      %s90 = sadd.s32 %s89, 1
      %s91 = scalar_select %p88, %s89, %s90
      %p94 = pneg %p88
      %p95 = scmp.eq.s32.totalorder %s32, 3
      %p96 = por %p94, %p95
      %p97 = scmp.ne.s32.totalorder %s89, %s92
      %p98 = scmp.eq.s32.totalorder %s32, 0
      %p99 = por %p97, %p98
      %p100 = scmp.ne.s32.totalorder %s89, %s92
      %p101 = scmp.eq.s32.totalorder %s37, 3
      %p102 = por %p100, %p101
      %p103 = scmp.ne.s32.totalorder %s92, %s93
      %p104 = scmp.eq.s32.totalorder %s37, 0
      %p105 = por %p103, %p104
      %p106 = scmp.ne.s32.totalorder %s92, %s93
      %p107 = scmp.eq.s32.totalorder %s38, 3
      %p108 = por %p106, %p107
      %p110 = scmp.ne.s32.totalorder %s93, %s109
      %p111 = scmp.eq.s32.totalorder %s38, 0
      %p112 = por %p110, %p111
      %s113 = ssub.s32 %s32, %s39
      %p114 = scmp.eq.s32.totalorder %s113, 0
      %s116 = sadd.s32 %s115, 1
      %s117 = scalar_select %p114, %s115, %s116
      %p120 = pneg %p114
      %p121 = scmp.eq.s32.totalorder %s32, 3
      %p122 = por %p120, %p121
      %p123 = scmp.ne.s32.totalorder %s115, %s118
      %p124 = scmp.eq.s32.totalorder %s32, 0
      %p125 = por %p123, %p124
      %p126 = scmp.ne.s32.totalorder %s115, %s118
      %p127 = scmp.eq.s32.totalorder %s37, 3
      %p128 = por %p126, %p127
      %p129 = scmp.ne.s32.totalorder %s118, %s119
      %p130 = scmp.eq.s32.totalorder %s37, 0
      %p131 = por %p129, %p130
      %p132 = scmp.ne.s32.totalorder %s118, %s119
      %p133 = scmp.eq.s32.totalorder %s38, 3
      %p134 = por %p132, %p133
      %p136 = scmp.ne.s32.totalorder %s119, %s135
      %p137 = scmp.eq.s32.totalorder %s38, 0
      %p138 = por %p136, %p137
      %s139 = ssub.s32 %s32, %s39
      %p140 = scmp.eq.s32.totalorder %s139, 0
      %s142 = sadd.s32 %s141, 1
      %s143 = scalar_select %p140, %s141, %s142
      %p146 = pneg %p140
      %p147 = scmp.eq.s32.totalorder %s32, 3
      %p148 = por %p146, %p147
      %p149 = scmp.ne.s32.totalorder %s141, %s144
      %p150 = scmp.eq.s32.totalorder %s32, 0
      %p151 = por %p149, %p150
      %p152 = scmp.ne.s32.totalorder %s141, %s144
      %p153 = scmp.eq.s32.totalorder %s37, 3
      %p154 = por %p152, %p153
      %p155 = scmp.ne.s32.totalorder %s144, %s145
      %p156 = scmp.eq.s32.totalorder %s37, 0
      %p157 = por %p155, %p156
      %p158 = scmp.ne.s32.totalorder %s144, %s145
      %p159 = scmp.eq.s32.totalorder %s38, 3
      %p160 = por %p158, %p159
      %p162 = scmp.ne.s32.totalorder %s145, %s161
      %p163 = scmp.eq.s32.totalorder %s38, 0
      %p164 = por %p162, %p163
      %s166 = sadd.s32 %s165, 1
      %p169 = scmp.eq.s32.totalorder %s32, 3
      %p170 = scmp.ne.s32.totalorder %s165, %s167
      %p171 = scmp.eq.s32.totalorder %s32, 0
      %p172 = por %p170, %p171
      %p173 = scmp.ne.s32.totalorder %s165, %s167
      %p174 = scmp.eq.s32.totalorder %s37, 3
      %p175 = por %p173, %p174
      %p176 = scmp.ne.s32.totalorder %s167, %s168
      %p177 = scmp.eq.s32.totalorder %s37, 0
      %p178 = por %p176, %p177
      %p179 = scmp.ne.s32.totalorder %s167, %s168
      %p180 = scmp.eq.s32.totalorder %s38, 3
      %p181 = por %p179, %p180
      %p183 = scmp.ne.s32.totalorder %s168, %s182
      %p184 = scmp.eq.s32.totalorder %s38, 0
      %p185 = por %p183, %p184
      %s187 = sadd.s32 %s186, 1
      %p190 = scmp.eq.s32.totalorder %s32, 3
      %p191 = scmp.ne.s32.totalorder %s186, %s188
      %p192 = scmp.eq.s32.totalorder %s32, 0
      %p193 = por %p191, %p192
      %p194 = scmp.ne.s32.totalorder %s186, %s188
      %p195 = scmp.eq.s32.totalorder %s37, 3
      %p196 = por %p194, %p195
      %p197 = scmp.ne.s32.totalorder %s188, %s189
      %p198 = scmp.eq.s32.totalorder %s37, 0
      %p199 = por %p197, %p198
      %p200 = scmp.ne.s32.totalorder %s188, %s189
      %p201 = scmp.eq.s32.totalorder %s38, 3
      %p202 = por %p200, %p201
      %p204 = scmp.ne.s32.totalorder %s189, %s203
      %p205 = scmp.eq.s32.totalorder %s38, 0
      %p206 = por %p204, %p205
      %s208 = sadd.s32 %s207, 1
      %p211 = scmp.eq.s32.totalorder %s32, 3
      %p212 = scmp.ne.s32.totalorder %s207, %s209
      %p213 = scmp.eq.s32.totalorder %s32, 0
      %p214 = por %p212, %p213
      %p215 = scmp.ne.s32.totalorder %s207, %s209
      %p216 = scmp.eq.s32.totalorder %s37, 3
      %p217 = por %p215, %p216
      %p218 = scmp.ne.s32.totalorder %s209, %s210
      %p219 = scmp.eq.s32.totalorder %s37, 0
      %p220 = por %p218, %p219
      %p221 = scmp.ne.s32.totalorder %s209, %s210
      %p222 = scmp.eq.s32.totalorder %s38, 3
      %p223 = por %p221, %p222
      %p225 = scmp.ne.s32.totalorder %s210, %s224
      %p226 = scmp.eq.s32.totalorder %s38, 0
      %p227 = por %p225, %p226
      %s229 = sadd.s32 %s228, 1
      %p232 = scmp.eq.s32.totalorder %s32, 3
      %p233 = scmp.ne.s32.totalorder %s228, %s230
      %p234 = scmp.eq.s32.totalorder %s32, 0
      %p235 = por %p233, %p234
      %p236 = scmp.ne.s32.totalorder %s228, %s230
      %p237 = scmp.eq.s32.totalorder %s37, 3
      %p238 = por %p236, %p237
      %p239 = scmp.ne.s32.totalorder %s230, %s231
      %p240 = scmp.eq.s32.totalorder %s37, 0
      %p241 = por %p239, %p240
      %p242 = scmp.ne.s32.totalorder %s230, %s231
      %p243 = scmp.eq.s32.totalorder %s38, 3
      %p244 = por %p242, %p243
      %p246 = scmp.ne.s32.totalorder %s231, %s245
      %p247 = scmp.eq.s32.totalorder %s38, 0
      %p248 = por %p246, %p247
      %s250 = sadd.s32 %s249, 1
      %p253 = scmp.eq.s32.totalorder %s32, 3
      %p254 = scmp.ne.s32.totalorder %s249, %s251
      %p255 = scmp.eq.s32.totalorder %s32, 0
      %p256 = por %p254, %p255
      %p257 = scmp.ne.s32.totalorder %s249, %s251
      %p258 = scmp.eq.s32.totalorder %s37, 3
      %p259 = por %p257, %p258
      %p260 = scmp.ne.s32.totalorder %s251, %s252
      %p261 = scmp.eq.s32.totalorder %s37, 0
      %p262 = por %p260, %p261
      %p263 = scmp.ne.s32.totalorder %s251, %s252
      %p264 = scmp.eq.s32.totalorder %s38, 3
      %p265 = por %p263, %p264
      %p267 = scmp.ne.s32.totalorder %s252, %s266
      %p268 = scmp.eq.s32.totalorder %s38, 0
      %p269 = por %p267, %p268
      %s271 = sadd.s32 %s270, 1
      %p274 = scmp.eq.s32.totalorder %s32, 3
      %p275 = scmp.ne.s32.totalorder %s270, %s272
      %p276 = scmp.eq.s32.totalorder %s32, 0
      %p277 = por %p275, %p276
      %p278 = scmp.ne.s32.totalorder %s270, %s272
      %p279 = scmp.eq.s32.totalorder %s37, 3
      %p280 = por %p278, %p279
      %p281 = scmp.ne.s32.totalorder %s272, %s273
      %p282 = scmp.eq.s32.totalorder %s37, 0
      %p283 = por %p281, %p282
      %p284 = scmp.ne.s32.totalorder %s272, %s273
      %p285 = scmp.eq.s32.totalorder %s38, 3
      %p286 = por %p284, %p285
      %p288 = scmp.ne.s32.totalorder %s273, %s287
      %p289 = scmp.eq.s32.totalorder %s38, 0
      %p290 = por %p288, %p289
      %s292 = sadd.s32 %s291, 1
      %p295 = scmp.eq.s32.totalorder %s32, 3
      %p296 = scmp.ne.s32.totalorder %s291, %s293
      %p297 = scmp.eq.s32.totalorder %s32, 0
      %p298 = por %p296, %p297
      %p299 = scmp.ne.s32.totalorder %s291, %s293
      %p300 = scmp.eq.s32.totalorder %s37, 3
      %p301 = por %p299, %p300
      %p302 = scmp.ne.s32.totalorder %s293, %s294
      %p303 = scmp.eq.s32.totalorder %s37, 0
      %p304 = por %p302, %p303
      %p305 = scmp.ne.s32.totalorder %s293, %s294
      %p306 = scmp.eq.s32.totalorder %s38, 3
      %p307 = por %p305, %p306
      %p309 = scmp.ne.s32.totalorder %s294, %s308
      %p310 = scmp.eq.s32.totalorder %s38, 0
      %p311 = por %p309, %p310
      %s312 = ssub.s32 %s32, %s39
      %p313 = scmp.eq.s32.totalorder %s312, 0
      %s315 = sadd.s32 %s314, 1
      %s316 = scalar_select %p313, %s314, %s315
      %p319 = pneg %p313
      %p320 = scmp.eq.s32.totalorder %s32, 3
      %p321 = por %p319, %p320
      %p322 = scmp.ne.s32.totalorder %s314, %s317
      %p323 = scmp.eq.s32.totalorder %s32, 0
      %p324 = por %p322, %p323
      %p325 = scmp.ne.s32.totalorder %s314, %s317
      %p326 = scmp.eq.s32.totalorder %s37, 3
      %p327 = por %p325, %p326
      %p328 = scmp.ne.s32.totalorder %s317, %s318
      %p329 = scmp.eq.s32.totalorder %s37, 0
      %p330 = por %p328, %p329
      %p331 = scmp.ne.s32.totalorder %s317, %s318
      %p332 = scmp.eq.s32.totalorder %s38, 3
      %p333 = por %p331, %p332
      %p335 = scmp.ne.s32.totalorder %s318, %s334
      %p336 = scmp.eq.s32.totalorder %s38, 0
      %p337 = por %p335, %p336
      %s339 = sadd.s32 %s338, 1
      %p342 = scmp.eq.s32.totalorder %s32, 3
      %p343 = scmp.ne.s32.totalorder %s338, %s340
      %p344 = scmp.eq.s32.totalorder %s32, 0
      %p345 = por %p343, %p344
      %p346 = scmp.ne.s32.totalorder %s338, %s340
      %p347 = scmp.eq.s32.totalorder %s37, 3
      %p348 = por %p346, %p347
      %p349 = scmp.ne.s32.totalorder %s340, %s341
      %p350 = scmp.eq.s32.totalorder %s37, 0
      %p351 = por %p349, %p350
      %p352 = scmp.ne.s32.totalorder %s340, %s341
      %p353 = scmp.eq.s32.totalorder %s38, 3
      %p354 = por %p352, %p353
      %p356 = scmp.ne.s32.totalorder %s341, %s355
      %p357 = scmp.eq.s32.totalorder %s38, 0
      %p358 = por %p356, %p357
      %p359 = scmp.le.s32.totalorder 1, %s32
      %p360 = scmp.lt.s32.totalorder %s32, 5
      %p361 = pnand %p359, %p360
      %p362 = pneg %p361
      // Predicated region
      $region9: #{moco_forward.1} parent=5 // pred_check
        _
      $region10: #{moco_forward.1} parent=5 // pred_check_branch
        %364 = sbr.rel (%p361) target = $region12
      $region11: #{moco_forward.1} parent=5 // pred_region
        %s365 = ssub.s32 %s32, 1
        // Predicated region
        $region13: #{moco_forward.1} parent=11 // pred_check
          %p366 = pneg %p53
        $region14: #{moco_forward.1} parent=11 // pred_check_branch
          %368 = sbr.rel (%p366) target = $region16
        $region15: #{moco_forward.1} parent=11 // pred_region
          _
        $region16: #{moco_forward.1} parent=11 // pred_fallthru
          _
        // Predicated region
        $region17: #{moco_forward.1} parent=11 // pred_check
          %p369 = pneg %p178
        $region18: #{moco_forward.1} parent=11 // pred_check_branch
          %371 = sbr.rel (%p369) target = $region20
        $region19: #{moco_forward.1} parent=11 // pred_region
          _
        $region20: #{moco_forward.1} parent=11 // pred_fallthru
          _
        // Predicated region
        $region21: #{moco_forward.1} parent=11 // pred_check
          %p372 = pneg %p199
        $region22: #{moco_forward.1} parent=11 // pred_check_branch
          %374 = sbr.rel (%p372) target = $region24
        $region23: #{moco_forward.1} parent=11 // pred_region
          _
        $region24: #{moco_forward.1} parent=11 // pred_fallthru
          _
        // Predicated region
        $region25: #{moco_forward.1} parent=11 // pred_check
          %p375 = pneg %p220
        $region26: #{moco_forward.1} parent=11 // pred_check_branch
          %377 = sbr.rel (%p375) target = $region28
        $region27: #{moco_forward.1} parent=11 // pred_region
          _
        $region28: #{moco_forward.1} parent=11 // pred_fallthru
          _
        // Predicated region
        $region29: #{moco_forward.1} parent=11 // pred_check
          %p378 = pneg %p241
        $region30: #{moco_forward.1} parent=11 // pred_check_branch
          %380 = sbr.rel (%p378) target = $region32
        $region31: #{moco_forward.1} parent=11 // pred_region
          _
        $region32: #{moco_forward.1} parent=11 // pred_fallthru
          _
        // Predicated region
        $region33: #{moco_forward.1} parent=11 // pred_check
          %p381 = pneg %p262
        $region34: #{moco_forward.1} parent=11 // pred_check_branch
          %383 = sbr.rel (%p381) target = $region36
        $region35: #{moco_forward.1} parent=11 // pred_region
          _
        $region36: #{moco_forward.1} parent=11 // pred_fallthru
          _
        // Predicated region
        $region37: #{moco_forward.1} parent=11 // pred_check
          %p384 = pneg %p283
        $region38: #{moco_forward.1} parent=11 // pred_check_branch
          %386 = sbr.rel (%p384) target = $region40
        $region39: #{moco_forward.1} parent=11 // pred_region
          %s388 = ssub.s32 2048, 2048
          %389 = vsyncadd [#allocation10], %s388
          %s390 = sshll.u32 [#allocation11], 4
          %s391 = int_to_ptr.vmem [resolvable:$true] %s390
          %396 = dma.hbm_to_vmem [thread:$0]  %s10, 2048, %s391, [#allocation10], 64, 64, 4
        $region40: #{moco_forward.1} parent=11 // pred_fallthru
          _
      $region12: #{moco_forward.1} parent=5 // pred_fallthru
        _
      %p397 = scmp.lt.s32.totalorder %s32, 4
      // Predicated region
      $region41: #{moco_forward.1} parent=5 // pred_check
        %p398 = pneg %p397
      $region42: #{moco_forward.1} parent=5 // pred_check_branch
        %400 = sbr.rel (%p398) target = $region44
      $region43: #{moco_forward.1} parent=5 // pred_region
        // Predicated region
        $region45: #{moco_forward.1} parent=43 // pred_check
          %p401 = pneg %p73
        $region46: #{moco_forward.1} parent=43 // pred_check_branch
          %403 = sbr.rel (%p401) target = $region48
        $region47: #{moco_forward.1} parent=43 // pred_region
          %s404 = smul.u32 2, %s32
          %p405 = scmp.lt.s32.totalorder %s404, 7
          %s406 = scalar_select %p405, %s404, 7
          %s407 = smul.addr %s406, 8
          %s408 = scalar_lea.vmem %s1, %s407
          %s409 = smul.u32 2, %s32
        $region48: #{moco_forward.1} parent=43 // pred_fallthru
          _
        // Predicated region
        $region49: #{moco_forward.1} parent=43 // pred_check
          %p410 = pneg %p99
        $region50: #{moco_forward.1} parent=43 // pred_check_branch
          %412 = sbr.rel (%p410) target = $region52
        $region51: #{moco_forward.1} parent=43 // pred_region
          %s413 = smul.u32 2, %s32
          %p414 = scmp.lt.s32.totalorder %s413, 7
          %s415 = scalar_select %p414, %s413, 7
          %s416 = smul.addr %s415, 8
          %s417 = scalar_lea.vmem %s2, %s416
          %s418 = smul.u32 2, %s32
        $region52: #{moco_forward.1} parent=43 // pred_fallthru
          _
        // Predicated region
        $region53: #{moco_forward.1} parent=43 // pred_check
          %p419 = pneg %p125
        $region54: #{moco_forward.1} parent=43 // pred_check_branch
          %421 = sbr.rel (%p419) target = $region56
        $region55: #{moco_forward.1} parent=43 // pred_region
          %s422 = sand.u32 %s115, 1
          %s423 = scalar_lea.sflag [#allocation6], %s422
          %s424 = sand.u32 %s115, 1
          %s425 = smul.addr %s424, 512
          %s426 = scalar_lea.vmem [#allocation5], %s425
          %s427 = smul.u32 32, %s32
          %s429 = ssub.s32 8192, 8192
          %430 = vsyncadd %s423, %s429
          %s431 = smul.addr %s427, 2
          %s432 = smul.addr %s431, 128
          %s433 = scalar_lea.hbm %s3, %s432
          %s434 = sshll.u32 %s426, 4
          %s435 = int_to_ptr.vmem [resolvable:$true] %s434
          %440 = dma.hbm_to_vmem [thread:$0]  %s433, 8192, %s435, %s423, 256, 256, 16
        $region56: #{moco_forward.1} parent=43 // pred_fallthru
          _
        // Predicated region
        $region57: #{moco_forward.1} parent=43 // pred_check
          %p441 = pneg %p151
        $region58: #{moco_forward.1} parent=43 // pred_check_branch
          %443 = sbr.rel (%p441) target = $region60
        $region59: #{moco_forward.1} parent=43 // pred_region
          %s444 = sand.u32 %s32, 1
          %s445 = scalar_lea.sflag [#allocation10], %s444
          %s446 = sand.u32 %s141, 1
          %s447 = smul.addr %s446, 512
          %s448 = scalar_lea.vmem [#allocation9], %s447
          %s449 = smul.u32 32, %s32
          %s451 = ssub.s32 8192, 8192
          %452 = vsyncadd %s445, %s451
          %s453 = smul.addr %s449, 2
          %s454 = smul.addr %s453, 128
          %s455 = scalar_lea.hbm %s4, %s454
          %s456 = sshll.u32 %s448, 4
          %s457 = int_to_ptr.vmem [resolvable:$true] %s456
          %462 = dma.hbm_to_vmem [thread:$0]  %s455, 8192, %s457, %s445, 256, 256, 16
        $region60: #{moco_forward.1} parent=43 // pred_fallthru
          _
      $region44: #{moco_forward.1} parent=5 // pred_fallthru
        _
      %p463 = scmp.le.s32.totalorder 1, %s32
      %p464 = scmp.lt.s32.totalorder %s32, 5
      %p465 = pnand %p463, %p464
      %p466 = pneg %p465
      // Predicated region
      $region61: #{moco_forward.1} parent=5 // pred_check
        _
      $region62: #{moco_forward.1} parent=5 // pred_check_branch
        %468 = sbr.rel (%p465) target = $region64
      $region63: #{moco_forward.1} parent=5 // pred_region
        %s469 = ssub.s32 %s32, 1
        %s470 = sand.u32 %s118, 1
        %s471 = scalar_lea.sflag [#allocation6], %s470
        %s472 = sand.u32 %s118, 1
        %s473 = smul.addr %s472, 512
        %s474 = scalar_lea.vmem [#allocation5], %s473
        // Predicated region
        $region65: #{moco_forward.1} parent=63 // pred_check
          %p475 = pneg %p131
        $region66: #{moco_forward.1} parent=63 // pred_check_branch
          %477 = sbr.rel (%p475) target = $region68
        $region67: #{moco_forward.1} parent=63 // pred_region
          %478 = dma.done %s471, 8192
        $region68: #{moco_forward.1} parent=63 // pred_fallthru
          _
        %s479 = sand.u32 %s37, 1
        %s480 = scalar_lea.sflag [#allocation10], %s479
        %s481 = sand.u32 %s144, 1
        %s482 = smul.addr %s481, 512
        %s483 = scalar_lea.vmem [#allocation9], %s482
        // Predicated region
        $region69: #{moco_forward.1} parent=63 // pred_check
          %p484 = pneg %p157
        $region70: #{moco_forward.1} parent=63 // pred_check_branch
          %486 = sbr.rel (%p484) target = $region72
        $region71: #{moco_forward.1} parent=63 // pred_region
          %487 = dma.done %s480, 8192
        $region72: #{moco_forward.1} parent=63 // pred_fallthru
          _
        // Predicated region
        $region73: #{moco_forward.1} parent=63 // pred_check
          %p488 = pneg %p283
        $region74: #{moco_forward.1} parent=63 // pred_check_branch
          %490 = sbr.rel (%p488) target = $region76
        $region75: #{moco_forward.1} parent=63 // pred_region
          %491 = dma.done [#allocation10], 2048
        $region76: #{moco_forward.1} parent=63 // pred_fallthru
          _
        %p492 = pneg %p53
        %p493 = pneg %p50
        %s494 = smul.u32 2, %s37
        %p495 = scmp.lt.s32.totalorder %s494, 7
        %s496 = scalar_select %p495, %s494, 7
        %s497 = smul.addr %s496, 8
        %s498 = scalar_lea.vmem %s1, %s497
        %p499 = pneg %p79
        %p500 = pneg %p76
        %s501 = smul.u32 2, %s37
        %p502 = scmp.lt.s32.totalorder %s501, 7
        %s503 = scalar_select %p502, %s501, 7
        %s504 = smul.addr %s503, 8
        %s505 = scalar_lea.vmem %s2, %s504
        %p506 = pneg %p105
        %p507 = pneg %p102
        %s508 = sand.u32 %s118, 1
        %s509 = scalar_lea.sflag [#allocation6], %s508
        %s510 = sand.u32 %s118, 1
        %s511 = smul.addr %s510, 512
        %s512 = scalar_lea.vmem [#allocation5], %s511
        %p513 = pneg %p131
        %p514 = pneg %p128
        %s515 = sand.u32 %s37, 1
        %s516 = scalar_lea.sflag [#allocation10], %s515
        %s517 = sand.u32 %s144, 1
        %s518 = smul.addr %s517, 512
        %s519 = scalar_lea.vmem [#allocation9], %s518
        %p520 = pneg %p157
        %p521 = pneg %p154
        %p522 = pneg %p178
        %p523 = pneg %p175
        %p524 = pneg %p199
        %p525 = pneg %p196
        %p526 = pneg %p220
        %p527 = pneg %p217
        %p528 = pneg %p241
        %p529 = pneg %p238
        %p530 = pneg %p262
        %p531 = pneg %p259
        %p532 = pneg %p283
        %p533 = pneg %p280
        %p534 = pneg %p304
        %p535 = pneg %p301
        %p536 = pneg %p330
        %p537 = pneg %p327
        %s538 = sand.u32 %s317, 1
        %s539 = scalar_lea.sflag [#allocation7], %s538
        %s540 = sand.u32 %s317, 1
        %s541 = smul.addr %s540, 512
        %s542 = scalar_lea.vmem [#allocation13], %s541
        %p543 = pneg %p351
        %p544 = pneg %p348
        %s545 = smul.u32 2, %s37
        %p546 = scmp.lt.s32.totalorder %s545, 7
        %s547 = scalar_select %p546, %s545, 7
        %s548 = smul.addr %s547, 8
        %s549 = scalar_lea.vmem %s1, %s548
        %s550 = smul.u32 2, %s37
        %s551 = smul.u32 2, %s37
        %p552 = scmp.lt.s32.totalorder %s551, 7
        %s553 = scalar_select %p552, %s551, 7
        %s554 = smul.addr %s553, 8
        %s555 = scalar_lea.vmem %s2, %s554
        %s556 = smul.u32 2, %s37
        %s557 = smul.u32 32, %s37
        %s558 = smul.u32 32, %s37
        %s559 = smul.u32 32, %s37
        %s561 = sld [smem:[#allocation4]]
        %p562 = scmp.eq.s32.totalorder %s37, 0
        // Predicated region
        $region77: #{moco_forward.1} parent=63 // pred_check
          %p563 = pneg %p562
        $region78: #{moco_forward.1} parent=63 // pred_check_branch
          %565 = sbr.rel (%p563) target = $region80
        $region79: #{moco_forward.1} parent=63 // pred_region
          %566 = vst [vmem:[#allocation2] sm:$0xff] 0.0
          %567 = vst [vmem:[#allocation2 + $0x8] sm:$0xff] 0.0
          %568 = vst [vmem:[#allocation2 + $0x10] sm:$0xff] 0.0
          %569 = vst [vmem:[#allocation2 + $0x18] sm:$0xff] 0.0
          %570 = vst [vmem:[#allocation3] sm:$0xff] 0.0
          %571 = vst [vmem:[#allocation3 + $0x8] sm:$0xff] 0.0
          %572 = vst [vmem:[#allocation3 + $0x10] sm:$0xff] 0.0
          %573 = vst [vmem:[#allocation3 + $0x18] sm:$0xff] 0.0
        $region80: #{moco_forward.1} parent=63 // pred_fallthru
          _
        %v574 = vld [vmem:[%s483] sm:$0xff]
        %v575 = vld [vmem:[%s483 + $0x8] sm:$0xff]
        %v576 = vld [vmem:[%s483 + $0x10] sm:$0xff]
        %v577 = vld [vmem:[%s483 + $0x18] sm:$0xff]
        %v578 = vld [vmem:[%s483 + $0x20] sm:$0xff]
        %v579 = vld [vmem:[%s483 + $0x28] sm:$0xff]
        %v580 = vld [vmem:[%s483 + $0x30] sm:$0xff]
        %v581 = vld [vmem:[%s483 + $0x38] sm:$0xff]
        %v582 = vld [vmem:[%s483 + $0x40] sm:$0xff]
        %v583 = vld [vmem:[%s483 + $0x48] sm:$0xff]
        %v584 = vld [vmem:[%s483 + $0x50] sm:$0xff]
        %v585 = vld [vmem:[%s483 + $0x58] sm:$0xff]
        %v586 = vld [vmem:[%s483 + $0x60] sm:$0xff]
        %v587 = vld [vmem:[%s483 + $0x68] sm:$0xff]
        %v588 = vld [vmem:[%s483 + $0x70] sm:$0xff]
        %v589 = vld [vmem:[%s483 + $0x78] sm:$0xff]
        %v590 = vld [vmem:[%s483 + $0x80] sm:$0xff]
        %v591 = vld [vmem:[%s483 + $0x88] sm:$0xff]
        %v592 = vld [vmem:[%s483 + $0x90] sm:$0xff]
        %v593 = vld [vmem:[%s483 + $0x98] sm:$0xff]
        %v594 = vld [vmem:[%s483 + $0xa0] sm:$0xff]
        %v595 = vld [vmem:[%s483 + $0xa8] sm:$0xff]
        %v596 = vld [vmem:[%s483 + $0xb0] sm:$0xff]
        %v597 = vld [vmem:[%s483 + $0xb8] sm:$0xff]
        %v598 = vld [vmem:[%s483 + $0xc0] sm:$0xff]
        %v599 = vld [vmem:[%s483 + $0xc8] sm:$0xff]
        %v600 = vld [vmem:[%s483 + $0xd0] sm:$0xff]
        %v601 = vld [vmem:[%s483 + $0xd8] sm:$0xff]
        %v602 = vld [vmem:[%s483 + $0xe0] sm:$0xff]
        %v603 = vld [vmem:[%s483 + $0xe8] sm:$0xff]
        %v604 = vld [vmem:[%s483 + $0xf0] sm:$0xff]
        %v605 = vld [vmem:[%s483 + $0xf8] sm:$0xff]
        %v606 = vld [vmem:[%s483 + $0x100] sm:$0xff]
        %v607 = vld [vmem:[%s483 + $0x108] sm:$0xff]
        %v608 = vld [vmem:[%s483 + $0x110] sm:$0xff]
        %v609 = vld [vmem:[%s483 + $0x118] sm:$0xff]
        %v610 = vld [vmem:[%s483 + $0x120] sm:$0xff]
        %v611 = vld [vmem:[%s483 + $0x128] sm:$0xff]
        %v612 = vld [vmem:[%s483 + $0x130] sm:$0xff]
        %v613 = vld [vmem:[%s483 + $0x138] sm:$0xff]
        %v614 = vld [vmem:[%s483 + $0x140] sm:$0xff]
        %v615 = vld [vmem:[%s483 + $0x148] sm:$0xff]
        %v616 = vld [vmem:[%s483 + $0x150] sm:$0xff]
        %v617 = vld [vmem:[%s483 + $0x158] sm:$0xff]
        %v618 = vld [vmem:[%s483 + $0x160] sm:$0xff]
        %v619 = vld [vmem:[%s483 + $0x168] sm:$0xff]
        %v620 = vld [vmem:[%s483 + $0x170] sm:$0xff]
        %v621 = vld [vmem:[%s483 + $0x178] sm:$0xff]
        %v622 = vld [vmem:[%s483 + $0x180] sm:$0xff]
        %v623 = vld [vmem:[%s483 + $0x188] sm:$0xff]
        %v624 = vld [vmem:[%s483 + $0x190] sm:$0xff]
        %v625 = vld [vmem:[%s483 + $0x198] sm:$0xff]
        %v626 = vld [vmem:[%s483 + $0x1a0] sm:$0xff]
        %v627 = vld [vmem:[%s483 + $0x1a8] sm:$0xff]
        %v628 = vld [vmem:[%s483 + $0x1b0] sm:$0xff]
        %v629 = vld [vmem:[%s483 + $0x1b8] sm:$0xff]
        %v630 = vld [vmem:[%s483 + $0x1c0] sm:$0xff]
        %v631 = vld [vmem:[%s483 + $0x1c8] sm:$0xff]
        %v632 = vld [vmem:[%s483 + $0x1d0] sm:$0xff]
        %v633 = vld [vmem:[%s483 + $0x1d8] sm:$0xff]
        %v634 = vld [vmem:[%s483 + $0x1e0] sm:$0xff]
        %v635 = vld [vmem:[%s483 + $0x1e8] sm:$0xff]
        %v636 = vld [vmem:[%s483 + $0x1f0] sm:$0xff]
        %v637 = vld [vmem:[%s483 + $0x1f8] sm:$0xff]
        %v638 = vstv %s561
        %v639 = vmul.f32 %v574, %v638
        %v640 = vmul.f32 %v575, %v638
        %v641 = vmul.f32 %v576, %v638
        %v642 = vmul.f32 %v577, %v638
        %v643 = vmul.f32 %v578, %v638
        %v644 = vmul.f32 %v579, %v638
        %v645 = vmul.f32 %v580, %v638
        %v646 = vmul.f32 %v581, %v638
        %v647 = vmul.f32 %v582, %v638
        %v648 = vmul.f32 %v583, %v638
        %v649 = vmul.f32 %v584, %v638
        %v650 = vmul.f32 %v585, %v638
        %v651 = vmul.f32 %v586, %v638
        %v652 = vmul.f32 %v587, %v638
        %v653 = vmul.f32 %v588, %v638
        %v654 = vmul.f32 %v589, %v638
        %v655 = vmul.f32 %v590, %v638
        %v656 = vmul.f32 %v591, %v638
        %v657 = vmul.f32 %v592, %v638
        %v658 = vmul.f32 %v593, %v638
        %v659 = vmul.f32 %v594, %v638
        %v660 = vmul.f32 %v595, %v638
        %v661 = vmul.f32 %v596, %v638
        %v662 = vmul.f32 %v597, %v638
        %v663 = vmul.f32 %v598, %v638
        %v664 = vmul.f32 %v599, %v638
        %v665 = vmul.f32 %v600, %v638
        %v666 = vmul.f32 %v601, %v638
        %v667 = vmul.f32 %v602, %v638
        %v668 = vmul.f32 %v603, %v638
        %v669 = vmul.f32 %v604, %v638
        %v670 = vmul.f32 %v605, %v638
        %v671 = vmul.f32 %v606, %v638
        %v672 = vmul.f32 %v607, %v638
        %v673 = vmul.f32 %v608, %v638
        %v674 = vmul.f32 %v609, %v638
        %v675 = vmul.f32 %v610, %v638
        %v676 = vmul.f32 %v611, %v638
        %v677 = vmul.f32 %v612, %v638
        %v678 = vmul.f32 %v613, %v638
        %v679 = vmul.f32 %v614, %v638
        %v680 = vmul.f32 %v615, %v638
        %v681 = vmul.f32 %v616, %v638
        %v682 = vmul.f32 %v617, %v638
        %v683 = vmul.f32 %v618, %v638
        %v684 = vmul.f32 %v619, %v638
        %v685 = vmul.f32 %v620, %v638
        %v686 = vmul.f32 %v621, %v638
        %v687 = vmul.f32 %v622, %v638
        %v688 = vmul.f32 %v623, %v638
        %v689 = vmul.f32 %v624, %v638
        %v690 = vmul.f32 %v625, %v638
        %v691 = vmul.f32 %v626, %v638
        %v692 = vmul.f32 %v627, %v638
        %v693 = vmul.f32 %v628, %v638
        %v694 = vmul.f32 %v629, %v638
        %v695 = vmul.f32 %v630, %v638
        %v696 = vmul.f32 %v631, %v638
        %v697 = vmul.f32 %v632, %v638
        %v698 = vmul.f32 %v633, %v638
        %v699 = vmul.f32 %v634, %v638
        %v700 = vmul.f32 %v635, %v638
        %v701 = vmul.f32 %v636, %v638
        %v702 = vmul.f32 %v637, %v638
        %v703 = vld [vmem:[%s474] sm:$0xff]
        %v704 = vld [vmem:[%s474 + $0x8] sm:$0xff]
        %v705 = vld [vmem:[%s474 + $0x10] sm:$0xff]
        %v706 = vld [vmem:[%s474 + $0x18] sm:$0xff]
        %v707 = vld [vmem:[%s474 + $0x20] sm:$0xff]
        %v708 = vld [vmem:[%s474 + $0x28] sm:$0xff]
        %v709 = vld [vmem:[%s474 + $0x30] sm:$0xff]
        %v710 = vld [vmem:[%s474 + $0x38] sm:$0xff]
        %v711 = vld [vmem:[%s474 + $0x40] sm:$0xff]
        %v712 = vld [vmem:[%s474 + $0x48] sm:$0xff]
        %v713 = vld [vmem:[%s474 + $0x50] sm:$0xff]
        %v714 = vld [vmem:[%s474 + $0x58] sm:$0xff]
        %v715 = vld [vmem:[%s474 + $0x60] sm:$0xff]
        %v716 = vld [vmem:[%s474 + $0x68] sm:$0xff]
        %v717 = vld [vmem:[%s474 + $0x70] sm:$0xff]
        %v718 = vld [vmem:[%s474 + $0x78] sm:$0xff]
        %v719 = vld [vmem:[%s474 + $0x80] sm:$0xff]
        %v720 = vld [vmem:[%s474 + $0x88] sm:$0xff]
        %v721 = vld [vmem:[%s474 + $0x90] sm:$0xff]
        %v722 = vld [vmem:[%s474 + $0x98] sm:$0xff]
        %v723 = vld [vmem:[%s474 + $0xa0] sm:$0xff]
        %v724 = vld [vmem:[%s474 + $0xa8] sm:$0xff]
        %v725 = vld [vmem:[%s474 + $0xb0] sm:$0xff]
        %v726 = vld [vmem:[%s474 + $0xb8] sm:$0xff]
        %v727 = vld [vmem:[%s474 + $0xc0] sm:$0xff]
        %v728 = vld [vmem:[%s474 + $0xc8] sm:$0xff]
        %v729 = vld [vmem:[%s474 + $0xd0] sm:$0xff]
        %v730 = vld [vmem:[%s474 + $0xd8] sm:$0xff]
        %v731 = vld [vmem:[%s474 + $0xe0] sm:$0xff]
        %v732 = vld [vmem:[%s474 + $0xe8] sm:$0xff]
        %v733 = vld [vmem:[%s474 + $0xf0] sm:$0xff]
        %v734 = vld [vmem:[%s474 + $0xf8] sm:$0xff]
        %v735 = vld [vmem:[%s474 + $0x100] sm:$0xff]
        %v736 = vld [vmem:[%s474 + $0x108] sm:$0xff]
        %v737 = vld [vmem:[%s474 + $0x110] sm:$0xff]
        %v738 = vld [vmem:[%s474 + $0x118] sm:$0xff]
        %v739 = vld [vmem:[%s474 + $0x120] sm:$0xff]
        %v740 = vld [vmem:[%s474 + $0x128] sm:$0xff]
        %v741 = vld [vmem:[%s474 + $0x130] sm:$0xff]
        %v742 = vld [vmem:[%s474 + $0x138] sm:$0xff]
        %v743 = vld [vmem:[%s474 + $0x140] sm:$0xff]
        %v744 = vld [vmem:[%s474 + $0x148] sm:$0xff]
        %v745 = vld [vmem:[%s474 + $0x150] sm:$0xff]
        %v746 = vld [vmem:[%s474 + $0x158] sm:$0xff]
        %v747 = vld [vmem:[%s474 + $0x160] sm:$0xff]
        %v748 = vld [vmem:[%s474 + $0x168] sm:$0xff]
        %v749 = vld [vmem:[%s474 + $0x170] sm:$0xff]
        %v750 = vld [vmem:[%s474 + $0x178] sm:$0xff]
        %v751 = vld [vmem:[%s474 + $0x180] sm:$0xff]
        %v752 = vld [vmem:[%s474 + $0x188] sm:$0xff]
        %v753 = vld [vmem:[%s474 + $0x190] sm:$0xff]
        %v754 = vld [vmem:[%s474 + $0x198] sm:$0xff]
        %v755 = vld [vmem:[%s474 + $0x1a0] sm:$0xff]
        %v756 = vld [vmem:[%s474 + $0x1a8] sm:$0xff]
        %v757 = vld [vmem:[%s474 + $0x1b0] sm:$0xff]
        %v758 = vld [vmem:[%s474 + $0x1b8] sm:$0xff]
        %v759 = vld [vmem:[%s474 + $0x1c0] sm:$0xff]
        %v760 = vld [vmem:[%s474 + $0x1c8] sm:$0xff]
        %v761 = vld [vmem:[%s474 + $0x1d0] sm:$0xff]
        %v762 = vld [vmem:[%s474 + $0x1d8] sm:$0xff]
        %v763 = vld [vmem:[%s474 + $0x1e0] sm:$0xff]
        %v764 = vld [vmem:[%s474 + $0x1e8] sm:$0xff]
        %v765 = vld [vmem:[%s474 + $0x1f0] sm:$0xff]
        %v766 = vld [vmem:[%s474 + $0x1f8] sm:$0xff]
        %s767 = ssub.f32 1.0, %s561
        %v768 = vstv %s767
        %v769 = vmul.f32 %v703, %v768
        %v770 = vmul.f32 %v704, %v768
        %v771 = vmul.f32 %v705, %v768
        %v772 = vmul.f32 %v706, %v768
        %v773 = vmul.f32 %v707, %v768
        %v774 = vmul.f32 %v708, %v768
        %v775 = vmul.f32 %v709, %v768
        %v776 = vmul.f32 %v710, %v768
        %v777 = vmul.f32 %v711, %v768
        %v778 = vmul.f32 %v712, %v768
        %v779 = vmul.f32 %v713, %v768
        %v780 = vmul.f32 %v714, %v768
        %v781 = vmul.f32 %v715, %v768
        %v782 = vmul.f32 %v716, %v768
        %v783 = vmul.f32 %v717, %v768
        %v784 = vmul.f32 %v718, %v768
        %v785 = vmul.f32 %v719, %v768
        %v786 = vmul.f32 %v720, %v768
        %v787 = vmul.f32 %v721, %v768
        %v788 = vmul.f32 %v722, %v768
        %v789 = vmul.f32 %v723, %v768
        %v790 = vmul.f32 %v724, %v768
        %v791 = vmul.f32 %v725, %v768
        %v792 = vmul.f32 %v726, %v768
        %v793 = vmul.f32 %v727, %v768
        %v794 = vmul.f32 %v728, %v768
        %v795 = vmul.f32 %v729, %v768
        %v796 = vmul.f32 %v730, %v768
        %v797 = vmul.f32 %v731, %v768
        %v798 = vmul.f32 %v732, %v768
        %v799 = vmul.f32 %v733, %v768
        %v800 = vmul.f32 %v734, %v768
        %v801 = vmul.f32 %v735, %v768
        %v802 = vmul.f32 %v736, %v768
        %v803 = vmul.f32 %v737, %v768
        %v804 = vmul.f32 %v738, %v768
        %v805 = vmul.f32 %v739, %v768
        %v806 = vmul.f32 %v740, %v768
        %v807 = vmul.f32 %v741, %v768
        %v808 = vmul.f32 %v742, %v768
        %v809 = vmul.f32 %v743, %v768
        %v810 = vmul.f32 %v744, %v768
        %v811 = vmul.f32 %v745, %v768
        %v812 = vmul.f32 %v746, %v768
        %v813 = vmul.f32 %v747, %v768
        %v814 = vmul.f32 %v748, %v768
        %v815 = vmul.f32 %v749, %v768
        %v816 = vmul.f32 %v750, %v768
        %v817 = vmul.f32 %v751, %v768
        %v818 = vmul.f32 %v752, %v768
        %v819 = vmul.f32 %v753, %v768
        %v820 = vmul.f32 %v754, %v768
        %v821 = vmul.f32 %v755, %v768
        %v822 = vmul.f32 %v756, %v768
        %v823 = vmul.f32 %v757, %v768
        %v824 = vmul.f32 %v758, %v768
        %v825 = vmul.f32 %v759, %v768
        %v826 = vmul.f32 %v760, %v768
        %v827 = vmul.f32 %v761, %v768
        %v828 = vmul.f32 %v762, %v768
        %v829 = vmul.f32 %v763, %v768
        %v830 = vmul.f32 %v764, %v768
        %v831 = vmul.f32 %v765, %v768
        %v832 = vmul.f32 %v766, %v768
        %v833 = vadd.f32 %v639, %v769
        %v834 = vadd.f32 %v640, %v770
        %v835 = vadd.f32 %v641, %v771
        %v836 = vadd.f32 %v642, %v772
        %v837 = vadd.f32 %v643, %v773
        %v838 = vadd.f32 %v644, %v774
        %v839 = vadd.f32 %v645, %v775
        %v840 = vadd.f32 %v646, %v776
        %v841 = vadd.f32 %v647, %v777
        %v842 = vadd.f32 %v648, %v778
        %v843 = vadd.f32 %v649, %v779
        %v844 = vadd.f32 %v650, %v780
        %v845 = vadd.f32 %v651, %v781
        %v846 = vadd.f32 %v652, %v782
        %v847 = vadd.f32 %v653, %v783
        %v848 = vadd.f32 %v654, %v784
        %v849 = vadd.f32 %v655, %v785
        %v850 = vadd.f32 %v656, %v786
        %v851 = vadd.f32 %v657, %v787
        %v852 = vadd.f32 %v658, %v788
        %v853 = vadd.f32 %v659, %v789
        %v854 = vadd.f32 %v660, %v790
        %v855 = vadd.f32 %v661, %v791
        %v856 = vadd.f32 %v662, %v792
        %v857 = vadd.f32 %v663, %v793
        %v858 = vadd.f32 %v664, %v794
        %v859 = vadd.f32 %v665, %v795
        %v860 = vadd.f32 %v666, %v796
        %v861 = vadd.f32 %v667, %v797
        %v862 = vadd.f32 %v668, %v798
        %v863 = vadd.f32 %v669, %v799
        %v864 = vadd.f32 %v670, %v800
        %v865 = vadd.f32 %v671, %v801
        %v866 = vadd.f32 %v672, %v802
        %v867 = vadd.f32 %v673, %v803
        %v868 = vadd.f32 %v674, %v804
        %v869 = vadd.f32 %v675, %v805
        %v870 = vadd.f32 %v676, %v806
        %v871 = vadd.f32 %v677, %v807
        %v872 = vadd.f32 %v678, %v808
        %v873 = vadd.f32 %v679, %v809
        %v874 = vadd.f32 %v680, %v810
        %v875 = vadd.f32 %v681, %v811
        %v876 = vadd.f32 %v682, %v812
        %v877 = vadd.f32 %v683, %v813
        %v878 = vadd.f32 %v684, %v814
        %v879 = vadd.f32 %v685, %v815
        %v880 = vadd.f32 %v686, %v816
        %v881 = vadd.f32 %v687, %v817
        %v882 = vadd.f32 %v688, %v818
        %v883 = vadd.f32 %v689, %v819
        %v884 = vadd.f32 %v690, %v820
        %v885 = vadd.f32 %v691, %v821
        %v886 = vadd.f32 %v692, %v822
        %v887 = vadd.f32 %v693, %v823
        %v888 = vadd.f32 %v694, %v824
        %v889 = vadd.f32 %v695, %v825
        %v890 = vadd.f32 %v696, %v826
        %v891 = vadd.f32 %v697, %v827
        %v892 = vadd.f32 %v698, %v828
        %v893 = vadd.f32 %v699, %v829
        %v894 = vadd.f32 %v700, %v830
        %v895 = vadd.f32 %v701, %v831
        %v896 = vadd.f32 %v702, %v832
        %897 = vst [vmem:[%s542] sm:$0xff] %v833
        %898 = vst [vmem:[%s542 + $0x8] sm:$0xff] %v834
        %899 = vst [vmem:[%s542 + $0x10] sm:$0xff] %v835
        %900 = vst [vmem:[%s542 + $0x18] sm:$0xff] %v836
        %901 = vst [vmem:[%s542 + $0x20] sm:$0xff] %v837
        %902 = vst [vmem:[%s542 + $0x28] sm:$0xff] %v838
        %903 = vst [vmem:[%s542 + $0x30] sm:$0xff] %v839
        %904 = vst [vmem:[%s542 + $0x38] sm:$0xff] %v840
        %905 = vst [vmem:[%s542 + $0x40] sm:$0xff] %v841
        %906 = vst [vmem:[%s542 + $0x48] sm:$0xff] %v842
        %907 = vst [vmem:[%s542 + $0x50] sm:$0xff] %v843
        %908 = vst [vmem:[%s542 + $0x58] sm:$0xff] %v844
        %909 = vst [vmem:[%s542 + $0x60] sm:$0xff] %v845
        %910 = vst [vmem:[%s542 + $0x68] sm:$0xff] %v846
        %911 = vst [vmem:[%s542 + $0x70] sm:$0xff] %v847
        %912 = vst [vmem:[%s542 + $0x78] sm:$0xff] %v848
        %913 = vst [vmem:[%s542 + $0x80] sm:$0xff] %v849
        %914 = vst [vmem:[%s542 + $0x88] sm:$0xff] %v850
        %915 = vst [vmem:[%s542 + $0x90] sm:$0xff] %v851
        %916 = vst [vmem:[%s542 + $0x98] sm:$0xff] %v852
        %917 = vst [vmem:[%s542 + $0xa0] sm:$0xff] %v853
        %918 = vst [vmem:[%s542 + $0xa8] sm:$0xff] %v854
        %919 = vst [vmem:[%s542 + $0xb0] sm:$0xff] %v855
        %920 = vst [vmem:[%s542 + $0xb8] sm:$0xff] %v856
        %921 = vst [vmem:[%s542 + $0xc0] sm:$0xff] %v857
        %922 = vst [vmem:[%s542 + $0xc8] sm:$0xff] %v858
        %923 = vst [vmem:[%s542 + $0xd0] sm:$0xff] %v859
        %924 = vst [vmem:[%s542 + $0xd8] sm:$0xff] %v860
        %925 = vst [vmem:[%s542 + $0xe0] sm:$0xff] %v861
        %926 = vst [vmem:[%s542 + $0xe8] sm:$0xff] %v862
        %927 = vst [vmem:[%s542 + $0xf0] sm:$0xff] %v863
        %928 = vst [vmem:[%s542 + $0xf8] sm:$0xff] %v864
        %929 = vst [vmem:[%s542 + $0x100] sm:$0xff] %v865
        %930 = vst [vmem:[%s542 + $0x108] sm:$0xff] %v866
        %931 = vst [vmem:[%s542 + $0x110] sm:$0xff] %v867
        %932 = vst [vmem:[%s542 + $0x118] sm:$0xff] %v868
        %933 = vst [vmem:[%s542 + $0x120] sm:$0xff] %v869
        %934 = vst [vmem:[%s542 + $0x128] sm:$0xff] %v870
        %935 = vst [vmem:[%s542 + $0x130] sm:$0xff] %v871
        %936 = vst [vmem:[%s542 + $0x138] sm:$0xff] %v872
        %937 = vst [vmem:[%s542 + $0x140] sm:$0xff] %v873
        %938 = vst [vmem:[%s542 + $0x148] sm:$0xff] %v874
        %939 = vst [vmem:[%s542 + $0x150] sm:$0xff] %v875
        %940 = vst [vmem:[%s542 + $0x158] sm:$0xff] %v876
        %941 = vst [vmem:[%s542 + $0x160] sm:$0xff] %v877
        %942 = vst [vmem:[%s542 + $0x168] sm:$0xff] %v878
        %943 = vst [vmem:[%s542 + $0x170] sm:$0xff] %v879
        %944 = vst [vmem:[%s542 + $0x178] sm:$0xff] %v880
        %945 = vst [vmem:[%s542 + $0x180] sm:$0xff] %v881
        %946 = vst [vmem:[%s542 + $0x188] sm:$0xff] %v882
        %947 = vst [vmem:[%s542 + $0x190] sm:$0xff] %v883
        %948 = vst [vmem:[%s542 + $0x198] sm:$0xff] %v884
        %949 = vst [vmem:[%s542 + $0x1a0] sm:$0xff] %v885
        %950 = vst [vmem:[%s542 + $0x1a8] sm:$0xff] %v886
        %951 = vst [vmem:[%s542 + $0x1b0] sm:$0xff] %v887
        %952 = vst [vmem:[%s542 + $0x1b8] sm:$0xff] %v888
        %953 = vst [vmem:[%s542 + $0x1c0] sm:$0xff] %v889
        %954 = vst [vmem:[%s542 + $0x1c8] sm:$0xff] %v890
        %955 = vst [vmem:[%s542 + $0x1d0] sm:$0xff] %v891
        %956 = vst [vmem:[%s542 + $0x1d8] sm:$0xff] %v892
        %957 = vst [vmem:[%s542 + $0x1e0] sm:$0xff] %v893
        %958 = vst [vmem:[%s542 + $0x1e8] sm:$0xff] %v894
        %959 = vst [vmem:[%s542 + $0x1f0] sm:$0xff] %v895
        %960 = vst [vmem:[%s542 + $0x1f8] sm:$0xff] %v896
        %v961 = vld [vmem:[%s549] sm:$0xff]
        %v962 = vld [vmem:[%s549 + $0x8] sm:$0xff]
        %v963 = vld [vmem:[%s555] sm:$0xff]
        %v964 = vld [vmem:[%s555 + $0x8] sm:$0xff]
        %v965 = vld [vmem:[#allocation2] sm:$0xff]
        %v966 = vld [vmem:[#allocation2 + $0x8] sm:$0xff]
        %v967 = vld [vmem:[#allocation2 + $0x10] sm:$0xff]
        %v968 = vld [vmem:[#allocation2 + $0x18] sm:$0xff]
        %v969 = vld [vmem:[%s474] sm:$0xff]
        %v970 = vld [vmem:[%s474 + $0x8] sm:$0xff]
        %v971 = vld [vmem:[%s474 + $0x10] sm:$0xff]
        %v972 = vld [vmem:[%s474 + $0x18] sm:$0xff]
        %v973 = vld [vmem:[%s474 + $0x20] sm:$0xff]
        %v974 = vld [vmem:[%s474 + $0x28] sm:$0xff]
        %v975 = vld [vmem:[%s474 + $0x30] sm:$0xff]
        %v976 = vld [vmem:[%s474 + $0x38] sm:$0xff]
        %v977 = vld [vmem:[%s474 + $0x40] sm:$0xff]
        %v978 = vld [vmem:[%s474 + $0x48] sm:$0xff]
        %v979 = vld [vmem:[%s474 + $0x50] sm:$0xff]
        %v980 = vld [vmem:[%s474 + $0x58] sm:$0xff]
        %v981 = vld [vmem:[%s474 + $0x60] sm:$0xff]
        %v982 = vld [vmem:[%s474 + $0x68] sm:$0xff]
        %v983 = vld [vmem:[%s474 + $0x70] sm:$0xff]
        %v984 = vld [vmem:[%s474 + $0x78] sm:$0xff]
        %v985 = vld [vmem:[%s474 + $0x80] sm:$0xff]
        %v986 = vld [vmem:[%s474 + $0x88] sm:$0xff]
        %v987 = vld [vmem:[%s474 + $0x90] sm:$0xff]
        %v988 = vld [vmem:[%s474 + $0x98] sm:$0xff]
        %v989 = vld [vmem:[%s474 + $0xa0] sm:$0xff]
        %v990 = vld [vmem:[%s474 + $0xa8] sm:$0xff]
        %v991 = vld [vmem:[%s474 + $0xb0] sm:$0xff]
        %v992 = vld [vmem:[%s474 + $0xb8] sm:$0xff]
        %v993 = vld [vmem:[%s474 + $0xc0] sm:$0xff]
        %v994 = vld [vmem:[%s474 + $0xc8] sm:$0xff]
        %v995 = vld [vmem:[%s474 + $0xd0] sm:$0xff]
        %v996 = vld [vmem:[%s474 + $0xd8] sm:$0xff]
        %v997 = vld [vmem:[%s474 + $0xe0] sm:$0xff]
        %v998 = vld [vmem:[%s474 + $0xe8] sm:$0xff]
        %v999 = vld [vmem:[%s474 + $0xf0] sm:$0xff]
        %v1000 = vld [vmem:[%s474 + $0xf8] sm:$0xff]
        %v1001 = vld [vmem:[%s474 + $0x100] sm:$0xff]
        %v1002 = vld [vmem:[%s474 + $0x108] sm:$0xff]
        %v1003 = vld [vmem:[%s474 + $0x110] sm:$0xff]
        %v1004 = vld [vmem:[%s474 + $0x118] sm:$0xff]
        %v1005 = vld [vmem:[%s474 + $0x120] sm:$0xff]
        %v1006 = vld [vmem:[%s474 + $0x128] sm:$0xff]
        %v1007 = vld [vmem:[%s474 + $0x130] sm:$0xff]
        %v1008 = vld [vmem:[%s474 + $0x138] sm:$0xff]
        %v1009 = vld [vmem:[%s474 + $0x140] sm:$0xff]
        %v1010 = vld [vmem:[%s474 + $0x148] sm:$0xff]
        %v1011 = vld [vmem:[%s474 + $0x150] sm:$0xff]
        %v1012 = vld [vmem:[%s474 + $0x158] sm:$0xff]
        %v1013 = vld [vmem:[%s474 + $0x160] sm:$0xff]
        %v1014 = vld [vmem:[%s474 + $0x168] sm:$0xff]
        %v1015 = vld [vmem:[%s474 + $0x170] sm:$0xff]
        %v1016 = vld [vmem:[%s474 + $0x178] sm:$0xff]
        %v1017 = vld [vmem:[%s474 + $0x180] sm:$0xff]
        %v1018 = vld [vmem:[%s474 + $0x188] sm:$0xff]
        %v1019 = vld [vmem:[%s474 + $0x190] sm:$0xff]
        %v1020 = vld [vmem:[%s474 + $0x198] sm:$0xff]
        %v1021 = vld [vmem:[%s474 + $0x1a0] sm:$0xff]
        %v1022 = vld [vmem:[%s474 + $0x1a8] sm:$0xff]
        %v1023 = vld [vmem:[%s474 + $0x1b0] sm:$0xff]
        %v1024 = vld [vmem:[%s474 + $0x1b8] sm:$0xff]
        %v1025 = vld [vmem:[%s474 + $0x1c0] sm:$0xff]
        %v1026 = vld [vmem:[%s474 + $0x1c8] sm:$0xff]
        %v1027 = vld [vmem:[%s474 + $0x1d0] sm:$0xff]
        %v1028 = vld [vmem:[%s474 + $0x1d8] sm:$0xff]
        %v1029 = vld [vmem:[%s474 + $0x1e0] sm:$0xff]
        %v1030 = vld [vmem:[%s474 + $0x1e8] sm:$0xff]
        %v1031 = vld [vmem:[%s474 + $0x1f0] sm:$0xff]
        %v1032 = vld [vmem:[%s474 + $0x1f8] sm:$0xff]
        %v1033 = vpack.c.bf16 %v963, %v961
        %v1034 = vpack.c.bf16 %v964, %v962
        %v1035 = vpack.c.bf16 %v971, %v969
        %v1036 = vpack.c.bf16 %v972, %v970
        %v1037 = vpack.c.bf16 %v975, %v973
        %v1038 = vpack.c.bf16 %v976, %v974
        %v1039 = vpack.c.bf16 %v979, %v977
        %v1040 = vpack.c.bf16 %v980, %v978
        %v1041 = vpack.c.bf16 %v983, %v981
        %v1042 = vpack.c.bf16 %v984, %v982
        %v1043 = vpack.c.bf16 %v987, %v985
        %v1044 = vpack.c.bf16 %v988, %v986
        %v1045 = vpack.c.bf16 %v991, %v989
        %v1046 = vpack.c.bf16 %v992, %v990
        %v1047 = vpack.c.bf16 %v995, %v993
        %v1048 = vpack.c.bf16 %v996, %v994
        %v1049 = vpack.c.bf16 %v999, %v997
        %v1050 = vpack.c.bf16 %v1000, %v998
        %v1051 = vpack.c.bf16 %v1003, %v1001
        %v1052 = vpack.c.bf16 %v1004, %v1002
        %v1053 = vpack.c.bf16 %v1007, %v1005
        %v1054 = vpack.c.bf16 %v1008, %v1006
        %v1055 = vpack.c.bf16 %v1011, %v1009
        %v1056 = vpack.c.bf16 %v1012, %v1010
        %v1057 = vpack.c.bf16 %v1015, %v1013
        %v1058 = vpack.c.bf16 %v1016, %v1014
        %v1059 = vpack.c.bf16 %v1019, %v1017
        %v1060 = vpack.c.bf16 %v1020, %v1018
        %v1061 = vpack.c.bf16 %v1023, %v1021
        %v1062 = vpack.c.bf16 %v1024, %v1022
        %v1063 = vpack.c.bf16 %v1027, %v1025
        %v1064 = vpack.c.bf16 %v1028, %v1026
        %v1065 = vpack.c.bf16 %v1031, %v1029
        %v1066 = vpack.c.bf16 %v1032, %v1030
        %1067 = vmatprep.subr.bf16.mxu0 %v1036
        %1068 = vmatpush1.bf16.msra.mxu0 %v1035
        %1069 = vmatprep.subr.bf16.mxu0 %v1038
        %1070 = vmatpush1.bf16.msra.mxu0 %v1037
        %1071 = vmatprep.subr.bf16.mxu0 %v1040
        %1072 = vmatpush1.bf16.msra.mxu0 %v1039
        %1073 = vmatprep.subr.bf16.mxu0 %v1042
        %1074 = vmatpush1.bf16.msra.mxu0 %v1041
        %1075 = vmatprep.subr.bf16.mxu0 %v1044
        %1076 = vmatpush1.bf16.msra.mxu0 %v1043
        %1077 = vmatprep.subr.bf16.mxu0 %v1046
        %1078 = vmatpush1.bf16.msra.mxu0 %v1045
        %1079 = vmatprep.subr.bf16.mxu0 %v1048
        %1080 = vmatpush1.bf16.msra.mxu0 %v1047
        %1081 = vmatprep.subr.bf16.mxu0 %v1050
        %1082 = vmatpush1.bf16.msra.mxu0 %v1049
        %1083 = vmatprep.subr.bf16.mxu0 %v1052
        %1084 = vmatpush1.bf16.msra.mxu0 %v1051
        %1085 = vmatprep.subr.bf16.mxu0 %v1054
        %1086 = vmatpush1.bf16.msra.mxu0 %v1053
        %1087 = vmatprep.subr.bf16.mxu0 %v1056
        %1088 = vmatpush1.bf16.msra.mxu0 %v1055
        %1089 = vmatprep.subr.bf16.mxu0 %v1058
        %1090 = vmatpush1.bf16.msra.mxu0 %v1057
        %1091 = vmatprep.subr.bf16.mxu0 %v1060
        %1092 = vmatpush1.bf16.msra.mxu0 %v1059
        %1093 = vmatprep.subr.bf16.mxu0 %v1062
        %1094 = vmatpush1.bf16.msra.mxu0 %v1061
        %1095 = vmatprep.subr.bf16.mxu0 %v1064
        %1096 = vmatpush1.bf16.msra.mxu0 %v1063
        %1097 = vmatprep.subr.bf16.mxu0 %v1066
        %1098 = vmatpush1.bf16.msra.mxu0 %v1065
        %1099 = vmatprep.mubr.bf16.mxu0 %v1034
        %1100 = vmatmul.mubr.bf16.gmra.mrb[0].mxu0 %v1033
        %v1101 = vpop.f32.mrb[0].mxu0
        %v1102 = vadd.f32 0.0, %v1101
        %v1103 = vpop.f32.mrb[0].mxu0
        %v1104 = vadd.f32 0.0, %v1103
        %v1105 = vpop.f32.mrb[0].mxu0
        %v1106 = vadd.f32 0.0, %v1105
        %v1107 = vpop.f32.mrb[0].mxu0
        %v1108 = vadd.f32 0.0, %v1107
        %1109 = vdwg.mxu0
        %v1110 = vadd.f32 %v965, %v1102
        %v1111 = vadd.f32 %v966, %v1104
        %v1112 = vadd.f32 %v967, %v1106
        %v1113 = vadd.f32 %v968, %v1108
        %1114 = vst [vmem:[#allocation2] sm:$0xff] %v1110
        %1115 = vst [vmem:[#allocation2 + $0x8] sm:$0xff] %v1111
        %1116 = vst [vmem:[#allocation2 + $0x10] sm:$0xff] %v1112
        %1117 = vst [vmem:[#allocation2 + $0x18] sm:$0xff] %v1113
        %v1118 = vld [vmem:[#allocation3] sm:$0xff]
        %v1119 = vld [vmem:[#allocation3 + $0x8] sm:$0xff]
        %v1120 = vld [vmem:[#allocation3 + $0x10] sm:$0xff]
        %v1121 = vld [vmem:[#allocation3 + $0x18] sm:$0xff]
        %v1122 = vpack.c.bf16 %v835, %v833
        %v1123 = vpack.c.bf16 %v836, %v834
        %v1124 = vpack.c.bf16 %v839, %v837
        %v1125 = vpack.c.bf16 %v840, %v838
        %v1126 = vpack.c.bf16 %v843, %v841
        %v1127 = vpack.c.bf16 %v844, %v842
        %v1128 = vpack.c.bf16 %v847, %v845
        %v1129 = vpack.c.bf16 %v848, %v846
        %v1130 = vpack.c.bf16 %v851, %v849
        %v1131 = vpack.c.bf16 %v852, %v850
        %v1132 = vpack.c.bf16 %v855, %v853
        %v1133 = vpack.c.bf16 %v856, %v854
        %v1134 = vpack.c.bf16 %v859, %v857
        %v1135 = vpack.c.bf16 %v860, %v858
        %v1136 = vpack.c.bf16 %v863, %v861
        %v1137 = vpack.c.bf16 %v864, %v862
        %v1138 = vpack.c.bf16 %v867, %v865
        %v1139 = vpack.c.bf16 %v868, %v866
        %v1140 = vpack.c.bf16 %v871, %v869
        %v1141 = vpack.c.bf16 %v872, %v870
        %v1142 = vpack.c.bf16 %v875, %v873
        %v1143 = vpack.c.bf16 %v876, %v874
        %v1144 = vpack.c.bf16 %v879, %v877
        %v1145 = vpack.c.bf16 %v880, %v878
        %v1146 = vpack.c.bf16 %v883, %v881
        %v1147 = vpack.c.bf16 %v884, %v882
        %v1148 = vpack.c.bf16 %v887, %v885
        %v1149 = vpack.c.bf16 %v888, %v886
        %v1150 = vpack.c.bf16 %v891, %v889
        %v1151 = vpack.c.bf16 %v892, %v890
        %v1152 = vpack.c.bf16 %v895, %v893
        %v1153 = vpack.c.bf16 %v896, %v894
        %1154 = vmatprep.subr.bf16.mxu0 %v1123
        %1155 = vmatpush1.bf16.msra.mxu0 %v1122
        %1156 = vmatprep.subr.bf16.mxu0 %v1125
        %1157 = vmatpush1.bf16.msra.mxu0 %v1124
        %1158 = vmatprep.subr.bf16.mxu0 %v1127
        %1159 = vmatpush1.bf16.msra.mxu0 %v1126
        %1160 = vmatprep.subr.bf16.mxu0 %v1129
        %1161 = vmatpush1.bf16.msra.mxu0 %v1128
        %1162 = vmatprep.subr.bf16.mxu0 %v1131
        %1163 = vmatpush1.bf16.msra.mxu0 %v1130
        %1164 = vmatprep.subr.bf16.mxu0 %v1133
        %1165 = vmatpush1.bf16.msra.mxu0 %v1132
        %1166 = vmatprep.subr.bf16.mxu0 %v1135
        %1167 = vmatpush1.bf16.msra.mxu0 %v1134
        %1168 = vmatprep.subr.bf16.mxu0 %v1137
        %1169 = vmatpush1.bf16.msra.mxu0 %v1136
        %1170 = vmatprep.subr.bf16.mxu0 %v1139
        %1171 = vmatpush1.bf16.msra.mxu0 %v1138
        %1172 = vmatprep.subr.bf16.mxu0 %v1141
        %1173 = vmatpush1.bf16.msra.mxu0 %v1140
        %1174 = vmatprep.subr.bf16.mxu0 %v1143
        %1175 = vmatpush1.bf16.msra.mxu0 %v1142
        %1176 = vmatprep.subr.bf16.mxu0 %v1145
        %1177 = vmatpush1.bf16.msra.mxu0 %v1144
        %1178 = vmatprep.subr.bf16.mxu0 %v1147
        %1179 = vmatpush1.bf16.msra.mxu0 %v1146
        %1180 = vmatprep.subr.bf16.mxu0 %v1149
        %1181 = vmatpush1.bf16.msra.mxu0 %v1148
        %1182 = vmatprep.subr.bf16.mxu0 %v1151
        %1183 = vmatpush1.bf16.msra.mxu0 %v1150
        %1184 = vmatprep.subr.bf16.mxu0 %v1153
        %1185 = vmatpush1.bf16.msra.mxu0 %v1152
        %1186 = vmatprep.mubr.bf16.mxu0 %v1034
        %1187 = vmatmul.mubr.bf16.gmra.mrb[0].mxu0 %v1033
        %v1188 = vpop.f32.mrb[0].mxu0
        %v1189 = vadd.f32 0.0, %v1188
        %v1190 = vpop.f32.mrb[0].mxu0
        %v1191 = vadd.f32 0.0, %v1190
        %v1192 = vpop.f32.mrb[0].mxu0
        %v1193 = vadd.f32 0.0, %v1192
        %v1194 = vpop.f32.mrb[0].mxu0
        %v1195 = vadd.f32 0.0, %v1194
        %1196 = vdwg.mxu0
        %v1197 = vadd.f32 %v1118, %v1189
        %v1198 = vadd.f32 %v1119, %v1191
        %v1199 = vadd.f32 %v1120, %v1193
        %v1200 = vadd.f32 %v1121, %v1195
        %1201 = vst [vmem:[#allocation3] sm:$0xff] %v1197
        %1202 = vst [vmem:[#allocation3 + $0x8] sm:$0xff] %v1198
        %1203 = vst [vmem:[#allocation3 + $0x10] sm:$0xff] %v1199
        %1204 = vst [vmem:[#allocation3 + $0x18] sm:$0xff] %v1200
        %p1205 = scmp.eq.s32.totalorder %s37, 3
        // Predicated region
        $region81: #{moco_forward.1} parent=63 // pred_check
          %p1206 = pneg %p1205
        $region82: #{moco_forward.1} parent=63 // pred_check_branch
          %1208 = sbr.rel (%p1206) target = $region84
        $region83: #{moco_forward.1} parent=63 // pred_region
          %v1209 = vld [vmem:[%s6] sm:$0xff]
          %v1210 = vld [vmem:[%s6 + $0x8] sm:$0xff]
          %v1211 = vld [vmem:[%s6 + $0x10] sm:$0xff]
          %v1212 = vld [vmem:[%s6 + $0x18] sm:$0xff]
          %v1213 = vld [vmem:[%s6 + $0x20] sm:$0xff]
          %v1214 = vld [vmem:[%s6 + $0x28] sm:$0xff]
          %v1215 = vld [vmem:[%s6 + $0x30] sm:$0xff]
          %v1216 = vld [vmem:[%s6 + $0x38] sm:$0xff]
          %v1217 = vld [vmem:[%s6 + $0x40] sm:$0xff]
          %v1218 = vld [vmem:[%s6 + $0x48] sm:$0xff]
          %v1219 = vld [vmem:[%s6 + $0x50] sm:$0xff]
          %v1220 = vld [vmem:[%s6 + $0x58] sm:$0xff]
          %v1221 = vld [vmem:[%s6 + $0x60] sm:$0xff]
          %v1222 = vld [vmem:[%s6 + $0x68] sm:$0xff]
          %v1223 = vld [vmem:[%s6 + $0x70] sm:$0xff]
          %v1224 = vld [vmem:[%s6 + $0x78] sm:$0xff]
          %v1225 = vld [vmem:[%s6 + $0x80] sm:$0xff]
          %v1226 = vld [vmem:[%s6 + $0x88] sm:$0xff]
          %v1227 = vld [vmem:[%s6 + $0x90] sm:$0xff]
          %v1228 = vld [vmem:[%s6 + $0x98] sm:$0xff]
          %v1229 = vld [vmem:[%s6 + $0xa0] sm:$0xff]
          %v1230 = vld [vmem:[%s6 + $0xa8] sm:$0xff]
          %v1231 = vld [vmem:[%s6 + $0xb0] sm:$0xff]
          %v1232 = vld [vmem:[%s6 + $0xb8] sm:$0xff]
          %v1233 = vld [vmem:[%s6 + $0xc0] sm:$0xff]
          %v1234 = vld [vmem:[%s6 + $0xc8] sm:$0xff]
          %v1235 = vld [vmem:[%s6 + $0xd0] sm:$0xff]
          %v1236 = vld [vmem:[%s6 + $0xd8] sm:$0xff]
          %v1237 = vld [vmem:[%s6 + $0xe0] sm:$0xff]
          %v1238 = vld [vmem:[%s6 + $0xe8] sm:$0xff]
          %v1239 = vld [vmem:[%s6 + $0xf0] sm:$0xff]
          %v1240 = vld [vmem:[%s6 + $0xf8] sm:$0xff]
          %v1241 = vmul.f32 %v1209, %v638
          %v1242 = vmul.f32 %v1210, %v638
          %v1243 = vmul.f32 %v1211, %v638
          %v1244 = vmul.f32 %v1212, %v638
          %v1245 = vmul.f32 %v1213, %v638
          %v1246 = vmul.f32 %v1214, %v638
          %v1247 = vmul.f32 %v1215, %v638
          %v1248 = vmul.f32 %v1216, %v638
          %v1249 = vmul.f32 %v1217, %v638
          %v1250 = vmul.f32 %v1218, %v638
          %v1251 = vmul.f32 %v1219, %v638
          %v1252 = vmul.f32 %v1220, %v638
          %v1253 = vmul.f32 %v1221, %v638
          %v1254 = vmul.f32 %v1222, %v638
          %v1255 = vmul.f32 %v1223, %v638
          %v1256 = vmul.f32 %v1224, %v638
          %v1257 = vmul.f32 %v1225, %v638
          %v1258 = vmul.f32 %v1226, %v638
          %v1259 = vmul.f32 %v1227, %v638
          %v1260 = vmul.f32 %v1228, %v638
          %v1261 = vmul.f32 %v1229, %v638
          %v1262 = vmul.f32 %v1230, %v638
          %v1263 = vmul.f32 %v1231, %v638
          %v1264 = vmul.f32 %v1232, %v638
          %v1265 = vmul.f32 %v1233, %v638
          %v1266 = vmul.f32 %v1234, %v638
          %v1267 = vmul.f32 %v1235, %v638
          %v1268 = vmul.f32 %v1236, %v638
          %v1269 = vmul.f32 %v1237, %v638
          %v1270 = vmul.f32 %v1238, %v638
          %v1271 = vmul.f32 %v1239, %v638
          %v1272 = vmul.f32 %v1240, %v638
          %v1273 = vld [vmem:[%s5] sm:$0xff]
          %v1274 = vld [vmem:[%s5 + $0x8] sm:$0xff]
          %v1275 = vld [vmem:[%s5 + $0x10] sm:$0xff]
          %v1276 = vld [vmem:[%s5 + $0x18] sm:$0xff]
          %v1277 = vld [vmem:[%s5 + $0x20] sm:$0xff]
          %v1278 = vld [vmem:[%s5 + $0x28] sm:$0xff]
          %v1279 = vld [vmem:[%s5 + $0x30] sm:$0xff]
          %v1280 = vld [vmem:[%s5 + $0x38] sm:$0xff]
          %v1281 = vld [vmem:[%s5 + $0x40] sm:$0xff]
          %v1282 = vld [vmem:[%s5 + $0x48] sm:$0xff]
          %v1283 = vld [vmem:[%s5 + $0x50] sm:$0xff]
          %v1284 = vld [vmem:[%s5 + $0x58] sm:$0xff]
          %v1285 = vld [vmem:[%s5 + $0x60] sm:$0xff]
          %v1286 = vld [vmem:[%s5 + $0x68] sm:$0xff]
          %v1287 = vld [vmem:[%s5 + $0x70] sm:$0xff]
          %v1288 = vld [vmem:[%s5 + $0x78] sm:$0xff]
          %v1289 = vld [vmem:[%s5 + $0x80] sm:$0xff]
          %v1290 = vld [vmem:[%s5 + $0x88] sm:$0xff]
          %v1291 = vld [vmem:[%s5 + $0x90] sm:$0xff]
          %v1292 = vld [vmem:[%s5 + $0x98] sm:$0xff]
          %v1293 = vld [vmem:[%s5 + $0xa0] sm:$0xff]
          %v1294 = vld [vmem:[%s5 + $0xa8] sm:$0xff]
          %v1295 = vld [vmem:[%s5 + $0xb0] sm:$0xff]
          %v1296 = vld [vmem:[%s5 + $0xb8] sm:$0xff]
          %v1297 = vld [vmem:[%s5 + $0xc0] sm:$0xff]
          %v1298 = vld [vmem:[%s5 + $0xc8] sm:$0xff]
          %v1299 = vld [vmem:[%s5 + $0xd0] sm:$0xff]
          %v1300 = vld [vmem:[%s5 + $0xd8] sm:$0xff]
          %v1301 = vld [vmem:[%s5 + $0xe0] sm:$0xff]
          %v1302 = vld [vmem:[%s5 + $0xe8] sm:$0xff]
          %v1303 = vld [vmem:[%s5 + $0xf0] sm:$0xff]
          %v1304 = vld [vmem:[%s5 + $0xf8] sm:$0xff]
          %v1305 = vmul.f32 %v1273, %v768
          %v1306 = vmul.f32 %v1274, %v768
          %v1307 = vmul.f32 %v1275, %v768
          %v1308 = vmul.f32 %v1276, %v768
          %v1309 = vmul.f32 %v1277, %v768
          %v1310 = vmul.f32 %v1278, %v768
          %v1311 = vmul.f32 %v1279, %v768
          %v1312 = vmul.f32 %v1280, %v768
          %v1313 = vmul.f32 %v1281, %v768
          %v1314 = vmul.f32 %v1282, %v768
          %v1315 = vmul.f32 %v1283, %v768
          %v1316 = vmul.f32 %v1284, %v768
          %v1317 = vmul.f32 %v1285, %v768
          %v1318 = vmul.f32 %v1286, %v768
          %v1319 = vmul.f32 %v1287, %v768
          %v1320 = vmul.f32 %v1288, %v768
          %v1321 = vmul.f32 %v1289, %v768
          %v1322 = vmul.f32 %v1290, %v768
          %v1323 = vmul.f32 %v1291, %v768
          %v1324 = vmul.f32 %v1292, %v768
          %v1325 = vmul.f32 %v1293, %v768
          %v1326 = vmul.f32 %v1294, %v768
          %v1327 = vmul.f32 %v1295, %v768
          %v1328 = vmul.f32 %v1296, %v768
          %v1329 = vmul.f32 %v1297, %v768
          %v1330 = vmul.f32 %v1298, %v768
          %v1331 = vmul.f32 %v1299, %v768
          %v1332 = vmul.f32 %v1300, %v768
          %v1333 = vmul.f32 %v1301, %v768
          %v1334 = vmul.f32 %v1302, %v768
          %v1335 = vmul.f32 %v1303, %v768
          %v1336 = vmul.f32 %v1304, %v768
          %v1337 = vadd.f32 %v1241, %v1305
          %v1338 = vadd.f32 %v1242, %v1306
          %v1339 = vadd.f32 %v1243, %v1307
          %v1340 = vadd.f32 %v1244, %v1308
          %v1341 = vadd.f32 %v1245, %v1309
          %v1342 = vadd.f32 %v1246, %v1310
          %v1343 = vadd.f32 %v1247, %v1311
          %v1344 = vadd.f32 %v1248, %v1312
          %v1345 = vadd.f32 %v1249, %v1313
          %v1346 = vadd.f32 %v1250, %v1314
          %v1347 = vadd.f32 %v1251, %v1315
          %v1348 = vadd.f32 %v1252, %v1316
          %v1349 = vadd.f32 %v1253, %v1317
          %v1350 = vadd.f32 %v1254, %v1318
          %v1351 = vadd.f32 %v1255, %v1319
          %v1352 = vadd.f32 %v1256, %v1320
          %v1353 = vadd.f32 %v1257, %v1321
          %v1354 = vadd.f32 %v1258, %v1322
          %v1355 = vadd.f32 %v1259, %v1323
          %v1356 = vadd.f32 %v1260, %v1324
          %v1357 = vadd.f32 %v1261, %v1325
          %v1358 = vadd.f32 %v1262, %v1326
          %v1359 = vadd.f32 %v1263, %v1327
          %v1360 = vadd.f32 %v1264, %v1328
          %v1361 = vadd.f32 %v1265, %v1329
          %v1362 = vadd.f32 %v1266, %v1330
          %v1363 = vadd.f32 %v1267, %v1331
          %v1364 = vadd.f32 %v1268, %v1332
          %v1365 = vadd.f32 %v1269, %v1333
          %v1366 = vadd.f32 %v1270, %v1334
          %v1367 = vadd.f32 %v1271, %v1335
          %v1368 = vadd.f32 %v1272, %v1336
          %1369 = vst [vmem:[#allocation14] sm:$0xff] %v1337
          %1370 = vst [vmem:[#allocation14 + $0x8] sm:$0xff] %v1338
          %1371 = vst [vmem:[#allocation14 + $0x10] sm:$0xff] %v1339
          %1372 = vst [vmem:[#allocation14 + $0x18] sm:$0xff] %v1340
          %1373 = vst [vmem:[#allocation14 + $0x20] sm:$0xff] %v1341
          %1374 = vst [vmem:[#allocation14 + $0x28] sm:$0xff] %v1342
          %1375 = vst [vmem:[#allocation14 + $0x30] sm:$0xff] %v1343
          %1376 = vst [vmem:[#allocation14 + $0x38] sm:$0xff] %v1344
          %1377 = vst [vmem:[#allocation14 + $0x40] sm:$0xff] %v1345
          %1378 = vst [vmem:[#allocation14 + $0x48] sm:$0xff] %v1346
          %1379 = vst [vmem:[#allocation14 + $0x50] sm:$0xff] %v1347
          %1380 = vst [vmem:[#allocation14 + $0x58] sm:$0xff] %v1348
          %1381 = vst [vmem:[#allocation14 + $0x60] sm:$0xff] %v1349
          %1382 = vst [vmem:[#allocation14 + $0x68] sm:$0xff] %v1350
          %1383 = vst [vmem:[#allocation14 + $0x70] sm:$0xff] %v1351
          %1384 = vst [vmem:[#allocation14 + $0x78] sm:$0xff] %v1352
          %1385 = vst [vmem:[#allocation14 + $0x80] sm:$0xff] %v1353
          %1386 = vst [vmem:[#allocation14 + $0x88] sm:$0xff] %v1354
          %1387 = vst [vmem:[#allocation14 + $0x90] sm:$0xff] %v1355
          %1388 = vst [vmem:[#allocation14 + $0x98] sm:$0xff] %v1356
          %1389 = vst [vmem:[#allocation14 + $0xa0] sm:$0xff] %v1357
          %1390 = vst [vmem:[#allocation14 + $0xa8] sm:$0xff] %v1358
          %1391 = vst [vmem:[#allocation14 + $0xb0] sm:$0xff] %v1359
          %1392 = vst [vmem:[#allocation14 + $0xb8] sm:$0xff] %v1360
          %1393 = vst [vmem:[#allocation14 + $0xc0] sm:$0xff] %v1361
          %1394 = vst [vmem:[#allocation14 + $0xc8] sm:$0xff] %v1362
          %1395 = vst [vmem:[#allocation14 + $0xd0] sm:$0xff] %v1363
          %1396 = vst [vmem:[#allocation14 + $0xd8] sm:$0xff] %v1364
          %1397 = vst [vmem:[#allocation14 + $0xe0] sm:$0xff] %v1365
          %1398 = vst [vmem:[#allocation14 + $0xe8] sm:$0xff] %v1366
          %1399 = vst [vmem:[#allocation14 + $0xf0] sm:$0xff] %v1367
          %1400 = vst [vmem:[#allocation14 + $0xf8] sm:$0xff] %v1368
          %v1401 = vld [vmem:[#allocation2] sm:$0xff]
          %v1402 = vld [vmem:[#allocation2 + $0x8] sm:$0xff]
          %v1403 = vld [vmem:[#allocation2 + $0x10] sm:$0xff]
          %v1404 = vld [vmem:[#allocation2 + $0x18] sm:$0xff]
          %v1405 = vmax.f32 %v1401, 0.0
          %v1406 = vmax.f32 %v1402, 0.0
          %v1407 = vmax.f32 %v1403, 0.0
          %v1408 = vmax.f32 %v1404, 0.0
          %v1409 = vld [vmem:[%s5] sm:$0xff]
          %v1410 = vld [vmem:[%s5 + $0x8] sm:$0xff]
          %v1411 = vld [vmem:[%s5 + $0x10] sm:$0xff]
          %v1412 = vld [vmem:[%s5 + $0x18] sm:$0xff]
          %v1413 = vld [vmem:[%s5 + $0x20] sm:$0xff]
          %v1414 = vld [vmem:[%s5 + $0x28] sm:$0xff]
          %v1415 = vld [vmem:[%s5 + $0x30] sm:$0xff]
          %v1416 = vld [vmem:[%s5 + $0x38] sm:$0xff]
          %v1417 = vld [vmem:[%s5 + $0x40] sm:$0xff]
          %v1418 = vld [vmem:[%s5 + $0x48] sm:$0xff]
          %v1419 = vld [vmem:[%s5 + $0x50] sm:$0xff]
          %v1420 = vld [vmem:[%s5 + $0x58] sm:$0xff]
          %v1421 = vld [vmem:[%s5 + $0x60] sm:$0xff]
          %v1422 = vld [vmem:[%s5 + $0x68] sm:$0xff]
          %v1423 = vld [vmem:[%s5 + $0x70] sm:$0xff]
          %v1424 = vld [vmem:[%s5 + $0x78] sm:$0xff]
          %v1425 = vld [vmem:[%s5 + $0x80] sm:$0xff]
          %v1426 = vld [vmem:[%s5 + $0x88] sm:$0xff]
          %v1427 = vld [vmem:[%s5 + $0x90] sm:$0xff]
          %v1428 = vld [vmem:[%s5 + $0x98] sm:$0xff]
          %v1429 = vld [vmem:[%s5 + $0xa0] sm:$0xff]
          %v1430 = vld [vmem:[%s5 + $0xa8] sm:$0xff]
          %v1431 = vld [vmem:[%s5 + $0xb0] sm:$0xff]
          %v1432 = vld [vmem:[%s5 + $0xb8] sm:$0xff]
          %v1433 = vld [vmem:[%s5 + $0xc0] sm:$0xff]
          %v1434 = vld [vmem:[%s5 + $0xc8] sm:$0xff]
          %v1435 = vld [vmem:[%s5 + $0xd0] sm:$0xff]
          %v1436 = vld [vmem:[%s5 + $0xd8] sm:$0xff]
          %v1437 = vld [vmem:[%s5 + $0xe0] sm:$0xff]
          %v1438 = vld [vmem:[%s5 + $0xe8] sm:$0xff]
          %v1439 = vld [vmem:[%s5 + $0xf0] sm:$0xff]
          %v1440 = vld [vmem:[%s5 + $0xf8] sm:$0xff]
          %v1441 = vpack.c.bf16 %v1407, %v1405
          %v1442 = vpack.c.bf16 %v1408, %v1406
          %v1443 = vpack.c.bf16 %v1410, %v1409
          %v1444 = vpack.c.bf16 %v1412, %v1411
          %v1445 = vpack.c.bf16 %v1414, %v1413
          %v1446 = vpack.c.bf16 %v1416, %v1415
          %v1447 = vpack.c.bf16 %v1418, %v1417
          %v1448 = vpack.c.bf16 %v1420, %v1419
          %v1449 = vpack.c.bf16 %v1422, %v1421
          %v1450 = vpack.c.bf16 %v1424, %v1423
          %v1451 = vpack.c.bf16 %v1426, %v1425
          %v1452 = vpack.c.bf16 %v1428, %v1427
          %v1453 = vpack.c.bf16 %v1430, %v1429
          %v1454 = vpack.c.bf16 %v1432, %v1431
          %v1455 = vpack.c.bf16 %v1434, %v1433
          %v1456 = vpack.c.bf16 %v1436, %v1435
          %v1457 = vpack.c.bf16 %v1438, %v1437
          %v1458 = vpack.c.bf16 %v1440, %v1439
          %1459 = vmatprep.subr.bf16.mxu0 0
          %1460 = vmatpush1.bf16.msra.mxu0 %v1443
          %1461 = vmatprep.subr.bf16.mxu0 0
          %1462 = vmatpush1.bf16.msra.mxu0 %v1444
          %1463 = vmatprep.subr.bf16.mxu0 0
          %1464 = vmatpush1.bf16.msra.mxu0 %v1445
          %1465 = vmatprep.subr.bf16.mxu0 0
          %1466 = vmatpush1.bf16.msra.mxu0 %v1446
          %1467 = vmatprep.subr.bf16.mxu0 0
          %1468 = vmatpush1.bf16.msra.mxu0 %v1447
          %1469 = vmatprep.subr.bf16.mxu0 0
          %1470 = vmatpush1.bf16.msra.mxu0 %v1448
          %1471 = vmatprep.subr.bf16.mxu0 0
          %1472 = vmatpush1.bf16.msra.mxu0 %v1449
          %1473 = vmatprep.subr.bf16.mxu0 0
          %1474 = vmatpush1.bf16.msra.mxu0 %v1450
          %1475 = vmatprep.subr.bf16.mxu0 0
          %1476 = vmatpush1.bf16.msra.mxu0 %v1451
          %1477 = vmatprep.subr.bf16.mxu0 0
          %1478 = vmatpush1.bf16.msra.mxu0 %v1452
          %1479 = vmatprep.subr.bf16.mxu0 0
          %1480 = vmatpush1.bf16.msra.mxu0 %v1453
          %1481 = vmatprep.subr.bf16.mxu0 0
          %1482 = vmatpush1.bf16.msra.mxu0 %v1454
          %1483 = vmatprep.subr.bf16.mxu0 0
          %1484 = vmatpush1.bf16.msra.mxu0 %v1455
          %1485 = vmatprep.subr.bf16.mxu0 0
          %1486 = vmatpush1.bf16.msra.mxu0 %v1456
          %1487 = vmatprep.subr.bf16.mxu0 0
          %1488 = vmatpush1.bf16.msra.mxu0 %v1457
          %1489 = vmatprep.subr.bf16.mxu0 0
          %1490 = vmatpush1.bf16.msra.mxu0 %v1458
          %1491 = vmatprep.mubr.bf16.mxu0 %v1442
          %1492 = vmatmul.mubr.bf16.gmra.mrb[0].mxu0 %v1441
          %v1493 = vpop.f32.mrb[0].mxu0
          %v1494 = vadd.f32 0.0, %v1493
          %v1495 = vpop.f32.mrb[0].mxu0
          %v1496 = vpop.f32.mrb[0].mxu0
          %v1497 = vadd.f32 0.0, %v1496
          %v1498 = vpop.f32.mrb[0].mxu0
          %1499 = vdwg.mxu0
          %v1500 = vld [vmem:[#allocation3] sm:$0xff]
          %v1501 = vld [vmem:[#allocation3 + $0x8] sm:$0xff]
          %v1502 = vld [vmem:[#allocation3 + $0x10] sm:$0xff]
          %v1503 = vld [vmem:[#allocation3 + $0x18] sm:$0xff]
          %v1504 = vmax.f32 %v1500, 0.0
          %v1505 = vmax.f32 %v1501, 0.0
          %v1506 = vmax.f32 %v1502, 0.0
          %v1507 = vmax.f32 %v1503, 0.0
          %v1508 = vpack.c.bf16 %v1506, %v1504
          %v1509 = vpack.c.bf16 %v1507, %v1505
          %v1510 = vpack.c.bf16 %v1338, %v1337
          %v1511 = vpack.c.bf16 %v1340, %v1339
          %v1512 = vpack.c.bf16 %v1342, %v1341
          %v1513 = vpack.c.bf16 %v1344, %v1343
          %v1514 = vpack.c.bf16 %v1346, %v1345
          %v1515 = vpack.c.bf16 %v1348, %v1347
          %v1516 = vpack.c.bf16 %v1350, %v1349
          %v1517 = vpack.c.bf16 %v1352, %v1351
          %v1518 = vpack.c.bf16 %v1354, %v1353
          %v1519 = vpack.c.bf16 %v1356, %v1355
          %v1520 = vpack.c.bf16 %v1358, %v1357
          %v1521 = vpack.c.bf16 %v1360, %v1359
          %v1522 = vpack.c.bf16 %v1362, %v1361
          %v1523 = vpack.c.bf16 %v1364, %v1363
          %v1524 = vpack.c.bf16 %v1366, %v1365
          %v1525 = vpack.c.bf16 %v1368, %v1367
          %1526 = vmatprep.subr.bf16.mxu0 0
          %1527 = vmatpush1.bf16.msra.mxu0 %v1510
          %1528 = vmatprep.subr.bf16.mxu0 0
          %1529 = vmatpush1.bf16.msra.mxu0 %v1511
          %1530 = vmatprep.subr.bf16.mxu0 0
          %1531 = vmatpush1.bf16.msra.mxu0 %v1512
          %1532 = vmatprep.subr.bf16.mxu0 0
          %1533 = vmatpush1.bf16.msra.mxu0 %v1513
          %1534 = vmatprep.subr.bf16.mxu0 0
          %1535 = vmatpush1.bf16.msra.mxu0 %v1514
          %1536 = vmatprep.subr.bf16.mxu0 0
          %1537 = vmatpush1.bf16.msra.mxu0 %v1515
          %1538 = vmatprep.subr.bf16.mxu0 0
          %1539 = vmatpush1.bf16.msra.mxu0 %v1516
          %1540 = vmatprep.subr.bf16.mxu0 0
          %1541 = vmatpush1.bf16.msra.mxu0 %v1517
          %1542 = vmatprep.subr.bf16.mxu0 0
          %1543 = vmatpush1.bf16.msra.mxu0 %v1518
          %1544 = vmatprep.subr.bf16.mxu0 0
          %1545 = vmatpush1.bf16.msra.mxu0 %v1519
          %1546 = vmatprep.subr.bf16.mxu0 0
          %1547 = vmatpush1.bf16.msra.mxu0 %v1520
          %1548 = vmatprep.subr.bf16.mxu0 0
          %1549 = vmatpush1.bf16.msra.mxu0 %v1521
          %1550 = vmatprep.subr.bf16.mxu0 0
          %1551 = vmatpush1.bf16.msra.mxu0 %v1522
          %1552 = vmatprep.subr.bf16.mxu0 0
          %1553 = vmatpush1.bf16.msra.mxu0 %v1523
          %1554 = vmatprep.subr.bf16.mxu0 0
          %1555 = vmatpush1.bf16.msra.mxu0 %v1524
          %1556 = vmatprep.subr.bf16.mxu0 0
          %1557 = vmatpush1.bf16.msra.mxu0 %v1525
          %1558 = vmatprep.mubr.bf16.mxu0 %v1509
          %1559 = vmatmul.mubr.bf16.gmra.mrb[0].mxu0 %v1508
          %v1560 = vpop.f32.mrb[0].mxu0
          %v1561 = vadd.f32 0.0, %v1560
          %v1562 = vpop.f32.mrb[0].mxu0
          %v1563 = vpop.f32.mrb[0].mxu0
          %v1564 = vadd.f32 0.0, %v1563
          %v1565 = vpop.f32.mrb[0].mxu0
          %1566 = vdwg.mxu0
          %v1567 = vld [vmem:[%s7] sm:$0xff]
          %v1568 = vld [vmem:[%s7 + $0x8] sm:$0xff]
          %v1569 = vld [vmem:[%s7 + $0x10] sm:$0xff]
          %v1570 = vld [vmem:[%s7 + $0x18] sm:$0xff]
          %v1571 = vld [vmem:[%s7 + $0x20] sm:$0xff]
          %v1572 = vld [vmem:[%s7 + $0x28] sm:$0xff]
          %v1573 = vld [vmem:[%s7 + $0x30] sm:$0xff]
          %v1574 = vld [vmem:[%s7 + $0x38] sm:$0xff]
          %v1575 = vld [vmem:[%s7 + $0x40] sm:$0xff]
          %v1576 = vld [vmem:[%s7 + $0x48] sm:$0xff]
          %v1577 = vld [vmem:[%s7 + $0x50] sm:$0xff]
          %v1578 = vld [vmem:[%s7 + $0x58] sm:$0xff]
          %v1579 = vld [vmem:[%s7 + $0x60] sm:$0xff]
          %v1580 = vld [vmem:[%s7 + $0x68] sm:$0xff]
          %v1581 = vld [vmem:[%s7 + $0x70] sm:$0xff]
          %v1582 = vld [vmem:[%s7 + $0x78] sm:$0xff]
          %v1583 = vpack.c.bf16 %v1497, %v1494
          %v1600 = vunpack.c.l.b16 %v1567
          %v1601 = vunpack.c.h.b16 %v1567
          %v1602 = vunpack.c.l.b16 %v1568
          %v1603 = vunpack.c.h.b16 %v1568
          %v1604 = vunpack.c.l.b16 %v1569
          %v1605 = vunpack.c.h.b16 %v1569
          %v1606 = vunpack.c.l.b16 %v1570
          %v1607 = vunpack.c.h.b16 %v1570
          %v1608 = vunpack.c.l.b16 %v1571
          %v1609 = vunpack.c.h.b16 %v1571
          %v1610 = vunpack.c.l.b16 %v1572
          %v1611 = vunpack.c.h.b16 %v1572
          %v1612 = vunpack.c.l.b16 %v1573
          %v1613 = vunpack.c.h.b16 %v1573
          %v1614 = vunpack.c.l.b16 %v1574
          %v1615 = vunpack.c.h.b16 %v1574
          %v1616 = vunpack.c.l.b16 %v1575
          %v1617 = vunpack.c.h.b16 %v1575
          %v1618 = vunpack.c.l.b16 %v1576
          %v1619 = vunpack.c.h.b16 %v1576
          %v1620 = vunpack.c.l.b16 %v1577
          %v1621 = vunpack.c.h.b16 %v1577
          %v1622 = vunpack.c.l.b16 %v1578
          %v1623 = vunpack.c.h.b16 %v1578
          %v1624 = vunpack.c.l.b16 %v1579
          %v1625 = vunpack.c.h.b16 %v1579
          %v1626 = vunpack.c.l.b16 %v1580
          %v1627 = vunpack.c.h.b16 %v1580
          %v1628 = vunpack.c.l.b16 %v1581
          %v1629 = vunpack.c.h.b16 %v1581
          %v1630 = vunpack.c.l.b16 %v1582
          %v1631 = vunpack.c.h.b16 %v1582
          %v1632 = vpack.c.b16 %v1602, %v1600
          %v1633 = vpack.c.b16 %v1603, %v1601
          %v1634 = vpack.c.b16 %v1606, %v1604
          %v1635 = vpack.c.b16 %v1607, %v1605
          %v1636 = vpack.c.b16 %v1610, %v1608
          %v1637 = vpack.c.b16 %v1611, %v1609
          %v1638 = vpack.c.b16 %v1614, %v1612
          %v1639 = vpack.c.b16 %v1615, %v1613
          %v1640 = vpack.c.b16 %v1618, %v1616
          %v1641 = vpack.c.b16 %v1619, %v1617
          %v1642 = vpack.c.b16 %v1622, %v1620
          %v1643 = vpack.c.b16 %v1623, %v1621
          %v1644 = vpack.c.b16 %v1626, %v1624
          %v1645 = vpack.c.b16 %v1627, %v1625
          %v1646 = vpack.c.b16 %v1630, %v1628
          %v1647 = vpack.c.b16 %v1631, %v1629
          %1664 = vmatprep.subr.bf16.mxu0 %v1633
          %1665 = vmatpush1.bf16.msra.mxu0 %v1632
          %1666 = vmatprep.subr.bf16.mxu0 %v1635
          %1667 = vmatpush1.bf16.msra.mxu0 %v1634
          %1668 = vmatprep.subr.bf16.mxu0 %v1637
          %1669 = vmatpush1.bf16.msra.mxu0 %v1636
          %1670 = vmatprep.subr.bf16.mxu0 %v1639
          %1671 = vmatpush1.bf16.msra.mxu0 %v1638
          %1672 = vmatprep.subr.bf16.mxu0 %v1641
          %1673 = vmatpush1.bf16.msra.mxu0 %v1640
          %1674 = vmatprep.subr.bf16.mxu0 %v1643
          %1675 = vmatpush1.bf16.msra.mxu0 %v1642
          %1676 = vmatprep.subr.bf16.mxu0 %v1645
          %1677 = vmatpush1.bf16.msra.mxu0 %v1644
          %1678 = vmatprep.subr.bf16.mxu0 %v1647
          %1679 = vmatpush1.bf16.msra.mxu0 %v1646
          %1680 = vmatprep.subr.bf16.mxu0 0
          %1681 = vmatpush1.bf16.msra.mxu0 0
          %1682 = vmatprep.subr.bf16.mxu0 0
          %1683 = vmatpush1.bf16.msra.mxu0 0
          %1684 = vmatprep.subr.bf16.mxu0 0
          %1685 = vmatpush1.bf16.msra.mxu0 0
          %1686 = vmatprep.subr.bf16.mxu0 0
          %1687 = vmatpush1.bf16.msra.mxu0 0
          %1688 = vmatprep.subr.bf16.mxu0 0
          %1689 = vmatpush1.bf16.msra.mxu0 0
          %1690 = vmatprep.subr.bf16.mxu0 0
          %1691 = vmatpush1.bf16.msra.mxu0 0
          %1692 = vmatprep.subr.bf16.mxu0 0
          %1693 = vmatpush1.bf16.msra.mxu0 0
          %1694 = vmatprep.subr.bf16.mxu0 0
          %1695 = vmatpush1.bf16.msra.mxu0 0
          %1696 = vmatprep.mubr.bf16.mxu0 0
          %1697 = vmatmul.mubr.bf16.gmra.mrb[0].mxu0 %v1583
          %v1698 = vpop.f32.mrb[0].mxu0
          %v1699 = vadd.f32 0.0, %v1698
          %v1700 = vpop.f32.mrb[0].mxu0
          %v1701 = vadd.f32 0.0, %v1700
          %v1702 = vpop.f32.mrb[0].mxu0
          %v1703 = vadd.f32 0.0, %v1702
          %v1704 = vpop.f32.mrb[0].mxu0
          %v1705 = vadd.f32 0.0, %v1704
          %1706 = vdwg.mxu0
          %v1707 = vrot.slane %v1699, 4
          %v1708 = vadd.f32 %v1699, %v1707
          %v1709 = vrot.slane %v1708, 2
          %v1710 = vadd.f32 %v1708, %v1709
          %v1711 = vrot.slane %v1710, 1
          %v1712 = vadd.f32 %v1710, %v1711
          %v1713 = vrot.slane %v1701, 4
          %v1714 = vadd.f32 %v1701, %v1713
          %v1715 = vrot.slane %v1714, 2
          %v1716 = vadd.f32 %v1714, %v1715
          %v1717 = vrot.slane %v1716, 1
          %v1718 = vadd.f32 %v1716, %v1717
          %v1719 = vrot.slane %v1703, 4
          %v1720 = vadd.f32 %v1703, %v1719
          %v1721 = vrot.slane %v1720, 2
          %v1722 = vadd.f32 %v1720, %v1721
          %v1723 = vrot.slane %v1722, 1
          %v1724 = vadd.f32 %v1722, %v1723
          %v1725 = vrot.slane %v1705, 4
          %v1726 = vadd.f32 %v1705, %v1725
          %v1727 = vrot.slane %v1726, 2
          %v1728 = vadd.f32 %v1726, %v1727
          %v1729 = vrot.slane %v1728, 1
          %v1730 = vadd.f32 %v1728, %v1729
          %v1731 = vrcp.pop 8.0
          %v1732 = vmul.f32 %v1712, %v1731
          %v1733 = vmul.f32 %v1718, %v1731
          %v1734 = vmul.f32 %v1724, %v1731
          %v1735 = vmul.f32 %v1730, %v1731
          %v1736 = vsub.f32 %v1699, %v1732
          %v1737 = vsub.f32 %v1701, %v1733
          %v1738 = vsub.f32 %v1703, %v1734
          %v1739 = vsub.f32 %v1705, %v1735
          %v1740 = vmul.f32 %v1736, %v1736
          %v1741 = vmul.f32 %v1737, %v1737
          %v1742 = vmul.f32 %v1738, %v1738
          %v1743 = vmul.f32 %v1739, %v1739
          %v1744 = vrot.slane %v1740, 4
          %v1745 = vadd.f32 %v1740, %v1744
          %v1746 = vrot.slane %v1745, 2
          %v1747 = vadd.f32 %v1745, %v1746
          %v1748 = vrot.slane %v1747, 1
          %v1749 = vadd.f32 %v1747, %v1748
          %v1750 = vrot.slane %v1741, 4
          %v1751 = vadd.f32 %v1741, %v1750
          %v1752 = vrot.slane %v1751, 2
          %v1753 = vadd.f32 %v1751, %v1752
          %v1754 = vrot.slane %v1753, 1
          %v1755 = vadd.f32 %v1753, %v1754
          %v1756 = vrot.slane %v1742, 4
          %v1757 = vadd.f32 %v1742, %v1756
          %v1758 = vrot.slane %v1757, 2
          %v1759 = vadd.f32 %v1757, %v1758
          %v1760 = vrot.slane %v1759, 1
          %v1761 = vadd.f32 %v1759, %v1760
          %v1762 = vrot.slane %v1743, 4
          %v1763 = vadd.f32 %v1743, %v1762
          %v1764 = vrot.slane %v1763, 2
          %v1765 = vadd.f32 %v1763, %v1764
          %v1766 = vrot.slane %v1765, 1
          %v1767 = vadd.f32 %v1765, %v1766
          %v1768 = vmul.f32 %v1749, %v1731
          %v1769 = vmul.f32 %v1755, %v1731
          %v1770 = vmul.f32 %v1761, %v1731
          %v1771 = vmul.f32 %v1767, %v1731
          %v1772 = vadd.f32 %v1768, 1e-05
          %v1773 = vadd.f32 %v1769, 1e-05
          %v1774 = vadd.f32 %v1770, 1e-05
          %v1775 = vadd.f32 %v1771, 1e-05
          %v1776 = vrsqrt.pop %v1772
          %v1777 = vrsqrt.pop %v1773
          %v1778 = vrsqrt.pop %v1774
          %v1779 = vrsqrt.pop %v1775
          %v1780 = vmul.f32 %v1736, %v1776
          %v1781 = vmul.f32 %v1737, %v1777
          %v1782 = vmul.f32 %v1738, %v1778
          %v1783 = vmul.f32 %v1739, %v1779
          %v1784 = vld [vmem:[%s8] sm:$0x3]
          %v1786 = vlaneseq
          %v1787 = vshrl.u32 %v1786, 7
          %v1788 = vsub.s32 0, %v1787
          %v1789 = vrot.slane %v1784, %v1788
          %v1790 = vlaneseq
          %v1791 = vshrl.u32 %v1790, 7
          %v1792 = vsub.s32 1, %v1791
          %v1793 = vrot.slane %v1784, %v1792
          %v1796 = vmul.f32 %v1780, %v1789
          %v1797 = vmul.f32 %v1781, %v1793
          %v1798 = vmul.f32 %v1782, %v1789
          %v1799 = vmul.f32 %v1783, %v1793
          %v1800 = vld [vmem:[%s9] sm:$0x3]
          %v1802 = vlaneseq
          %v1803 = vshrl.u32 %v1802, 7
          %v1804 = vsub.s32 0, %v1803
          %v1805 = vrot.slane %v1800, %v1804
          %v1806 = vlaneseq
          %v1807 = vshrl.u32 %v1806, 7
          %v1808 = vsub.s32 1, %v1807
          %v1809 = vrot.slane %v1800, %v1808
          %v1812 = vadd.f32 %v1796, %v1805
          %v1813 = vadd.f32 %v1797, %v1809
          %v1814 = vadd.f32 %v1798, %v1805
          %v1815 = vadd.f32 %v1799, %v1809
          %v1816 = vmax.f32 %v1812, 0.0
          %v1817 = vmax.f32 %v1813, 0.0
          %v1818 = vmax.f32 %v1814, 0.0
          %v1819 = vmax.f32 %v1815, 0.0
          %v1820 = vld [vmem:[#allocation11] sm:$0xf]
          %v1821 = vld [vmem:[#allocation11 + $0x4] sm:$0xf]
          %v1822 = vld [vmem:[#allocation11 + $0x8] sm:$0xf]
          %v1823 = vld [vmem:[#allocation11 + $0xc] sm:$0xf]
          %v1824 = vld [vmem:[#allocation11 + $0x10] sm:$0xf]
          %v1825 = vld [vmem:[#allocation11 + $0x14] sm:$0xf]
          %v1826 = vld [vmem:[#allocation11 + $0x18] sm:$0xf]
          %v1827 = vld [vmem:[#allocation11 + $0x1c] sm:$0xf]
          %v1828 = vld [vmem:[#allocation11 + $0x20] sm:$0xf]
          %v1829 = vld [vmem:[#allocation11 + $0x24] sm:$0xf]
          %v1830 = vld [vmem:[#allocation11 + $0x28] sm:$0xf]
          %v1831 = vld [vmem:[#allocation11 + $0x2c] sm:$0xf]
          %v1832 = vld [vmem:[#allocation11 + $0x30] sm:$0xf]
          %v1833 = vld [vmem:[#allocation11 + $0x34] sm:$0xf]
          %v1834 = vld [vmem:[#allocation11 + $0x38] sm:$0xf]
          %v1835 = vld [vmem:[#allocation11 + $0x3c] sm:$0xf]
          %v1836 = vld [vmem:[#allocation11 + $0x40] sm:$0xf]
          %v1837 = vld [vmem:[#allocation11 + $0x44] sm:$0xf]
          %v1838 = vld [vmem:[#allocation11 + $0x48] sm:$0xf]
          %v1839 = vld [vmem:[#allocation11 + $0x4c] sm:$0xf]
          %v1840 = vld [vmem:[#allocation11 + $0x50] sm:$0xf]
          %v1841 = vld [vmem:[#allocation11 + $0x54] sm:$0xf]
          %v1842 = vld [vmem:[#allocation11 + $0x58] sm:$0xf]
          %v1843 = vld [vmem:[#allocation11 + $0x5c] sm:$0xf]
          %v1844 = vld [vmem:[#allocation11 + $0x60] sm:$0xf]
          %v1845 = vld [vmem:[#allocation11 + $0x64] sm:$0xf]
          %v1846 = vld [vmem:[#allocation11 + $0x68] sm:$0xf]
          %v1847 = vld [vmem:[#allocation11 + $0x6c] sm:$0xf]
          %v1848 = vld [vmem:[#allocation11 + $0x70] sm:$0xf]
          %v1849 = vld [vmem:[#allocation11 + $0x74] sm:$0xf]
          %v1850 = vld [vmem:[#allocation11 + $0x78] sm:$0xf]
          %v1851 = vld [vmem:[#allocation11 + $0x7c] sm:$0xf]
          %v1852 = vpack.c.bf16 %v1818, %v1816
          %v1853 = vpack.c.bf16 %v1819, %v1817
          %v1886 = vunpack.c.l.b16 %v1820
          %v1887 = vunpack.c.l.b16 %v1821
          %v1888 = vunpack.c.l.b16 %v1822
          %v1889 = vunpack.c.l.b16 %v1823
          %v1890 = vunpack.c.l.b16 %v1824
          %v1891 = vunpack.c.l.b16 %v1825
          %v1892 = vunpack.c.l.b16 %v1826
          %v1893 = vunpack.c.l.b16 %v1827
          %v1894 = vunpack.c.l.b16 %v1828
          %v1895 = vunpack.c.l.b16 %v1829
          %v1896 = vunpack.c.l.b16 %v1830
          %v1897 = vunpack.c.l.b16 %v1831
          %v1898 = vunpack.c.l.b16 %v1832
          %v1899 = vunpack.c.l.b16 %v1833
          %v1900 = vunpack.c.l.b16 %v1834
          %v1901 = vunpack.c.l.b16 %v1835
          %v1902 = vunpack.c.l.b16 %v1836
          %v1903 = vunpack.c.l.b16 %v1837
          %v1904 = vunpack.c.l.b16 %v1838
          %v1905 = vunpack.c.l.b16 %v1839
          %v1906 = vunpack.c.l.b16 %v1840
          %v1907 = vunpack.c.l.b16 %v1841
          %v1908 = vunpack.c.l.b16 %v1842
          %v1909 = vunpack.c.l.b16 %v1843
          %v1910 = vunpack.c.l.b16 %v1844
          %v1911 = vunpack.c.l.b16 %v1845
          %v1912 = vunpack.c.l.b16 %v1846
          %v1913 = vunpack.c.l.b16 %v1847
          %v1914 = vunpack.c.l.b16 %v1848
          %v1915 = vunpack.c.l.b16 %v1849
          %v1916 = vunpack.c.l.b16 %v1850
          %v1917 = vunpack.c.l.b16 %v1851
          %v1918 = vpack.c.b16 %v1887, %v1886
          %v1919 = vpack.c.b16 %v1889, %v1888
          %v1920 = vpack.c.b16 %v1891, %v1890
          %v1921 = vpack.c.b16 %v1893, %v1892
          %v1922 = vpack.c.b16 %v1895, %v1894
          %v1923 = vpack.c.b16 %v1897, %v1896
          %v1924 = vpack.c.b16 %v1899, %v1898
          %v1925 = vpack.c.b16 %v1901, %v1900
          %v1926 = vpack.c.b16 %v1903, %v1902
          %v1927 = vpack.c.b16 %v1905, %v1904
          %v1928 = vpack.c.b16 %v1907, %v1906
          %v1929 = vpack.c.b16 %v1909, %v1908
          %v1930 = vpack.c.b16 %v1911, %v1910
          %v1931 = vpack.c.b16 %v1913, %v1912
          %v1932 = vpack.c.b16 %v1915, %v1914
          %v1933 = vpack.c.b16 %v1917, %v1916
          %1950 = vmatprep.subr.bf16.mxu0 0
          %1951 = vmatpush1.bf16.msra.mxu0 %v1918
          %1952 = vmatprep.subr.bf16.mxu0 0
          %1953 = vmatpush1.bf16.msra.mxu0 %v1919
          %1954 = vmatprep.subr.bf16.mxu0 0
          %1955 = vmatpush1.bf16.msra.mxu0 %v1920
          %1956 = vmatprep.subr.bf16.mxu0 0
          %1957 = vmatpush1.bf16.msra.mxu0 %v1921
          %1958 = vmatprep.subr.bf16.mxu0 0
          %1959 = vmatpush1.bf16.msra.mxu0 %v1922
          %1960 = vmatprep.subr.bf16.mxu0 0
          %1961 = vmatpush1.bf16.msra.mxu0 %v1923
          %1962 = vmatprep.subr.bf16.mxu0 0
          %1963 = vmatpush1.bf16.msra.mxu0 %v1924
          %1964 = vmatprep.subr.bf16.mxu0 0
          %1965 = vmatpush1.bf16.msra.mxu0 %v1925
          %1966 = vmatprep.subr.bf16.mxu0 0
          %1967 = vmatpush1.bf16.msra.mxu0 %v1926
          %1968 = vmatprep.subr.bf16.mxu0 0
          %1969 = vmatpush1.bf16.msra.mxu0 %v1927
          %1970 = vmatprep.subr.bf16.mxu0 0
          %1971 = vmatpush1.bf16.msra.mxu0 %v1928
          %1972 = vmatprep.subr.bf16.mxu0 0
          %1973 = vmatpush1.bf16.msra.mxu0 %v1929
          %1974 = vmatprep.subr.bf16.mxu0 0
          %1975 = vmatpush1.bf16.msra.mxu0 %v1930
          %1976 = vmatprep.subr.bf16.mxu0 0
          %1977 = vmatpush1.bf16.msra.mxu0 %v1931
          %1978 = vmatprep.subr.bf16.mxu0 0
          %1979 = vmatpush1.bf16.msra.mxu0 %v1932
          %1980 = vmatprep.subr.bf16.mxu0 0
          %1981 = vmatpush1.bf16.msra.mxu0 %v1933
          %1982 = vmatprep.mubr.bf16.mxu0 %v1853
          %1983 = vmatmul.mubr.bf16.gmra.mrb[0].mxu0 %v1852
          %v1984 = vpop.f32.mrb[0].mxu0
          %v1985 = vadd.f32 0.0, %v1984
          %v1986 = vpop.f32.mrb[0].mxu0
          %v1987 = vpop.f32.mrb[0].mxu0
          %v1988 = vadd.f32 0.0, %v1987
          %v1989 = vpop.f32.mrb[0].mxu0
          %1990 = vdwg.mxu0
          %v1991 = vrot.slane %v1985, 4
          %v1992 = vadd.f32 %v1985, %v1991
          %v1993 = vrot.slane %v1992, 2
          %v1994 = vadd.f32 %v1992, %v1993
          %v1995 = vrot.slane %v1994, 1
          %v1996 = vadd.f32 %v1994, %v1995
          %v1997 = vrot.slane %v1988, 4
          %v1998 = vadd.f32 %v1988, %v1997
          %v1999 = vrot.slane %v1998, 2
          %v2000 = vadd.f32 %v1998, %v1999
          %v2001 = vrot.slane %v2000, 1
          %v2002 = vadd.f32 %v2000, %v2001
          %v2003 = vmul.f32 %v1996, %v1731
          %v2004 = vmul.f32 %v2002, %v1731
          %v2005 = vsub.f32 %v1985, %v2003
          %v2006 = vsub.f32 %v1988, %v2004
          %v2007 = vmul.f32 %v2005, %v2005
          %v2008 = vmul.f32 %v2006, %v2006
          %v2009 = vrot.slane %v2007, 4
          %v2010 = vadd.f32 %v2007, %v2009
          %v2011 = vrot.slane %v2010, 2
          %v2012 = vadd.f32 %v2010, %v2011
          %v2013 = vrot.slane %v2012, 1
          %v2014 = vadd.f32 %v2012, %v2013
          %v2015 = vrot.slane %v2008, 4
          %v2016 = vadd.f32 %v2008, %v2015
          %v2017 = vrot.slane %v2016, 2
          %v2018 = vadd.f32 %v2016, %v2017
          %v2019 = vrot.slane %v2018, 1
          %v2020 = vadd.f32 %v2018, %v2019
          %v2021 = vmul.f32 %v2014, %v1731
          %v2022 = vmul.f32 %v2020, %v1731
          %v2023 = vadd.f32 %v2021, 1e-05
          %v2024 = vadd.f32 %v2022, 1e-05
          %v2025 = vrsqrt.pop %v2023
          %v2026 = vrsqrt.pop %v2024
          %v2027 = vmul.f32 %v2005, %v2025
          %v2028 = vmul.f32 %v2006, %v2026
          %v2029 = vpack.c.bf16 %v2028, %v2028
          %v2030 = vpack.c.bf16 %v1561, %v1561
          %2031 = vmatprep.subr.bf16.mxu0 0
          %2032 = vmatpush1.bf16.xpose.msra.mxu0 %v2030
          %2033 = vmatprep.subr.bf16.mxu0 0
          %2034 = vmatpush1.bf16.xpose.msra.mxu0 0
          %2035 = vmatprep.subr.bf16.mxu0 0
          %2036 = vmatpush1.bf16.xpose.msra.mxu0 0
          %2037 = vmatprep.subr.bf16.mxu0 0
          %2038 = vmatpush1.bf16.xpose.msra.mxu0 0
          %2039 = vmatprep.subr.bf16.mxu0 0
          %2040 = vmatpush1.bf16.xpose.msra.mxu0 0
          %2041 = vmatprep.subr.bf16.mxu0 0
          %2042 = vmatpush1.bf16.xpose.msra.mxu0 0
          %2043 = vmatprep.subr.bf16.mxu0 0
          %2044 = vmatpush1.bf16.xpose.msra.mxu0 0
          %2045 = vmatprep.subr.bf16.mxu0 0
          %2046 = vmatpush1.bf16.xpose.msra.mxu0 0
          %2047 = vmatprep.subr.bf16.mxu0 0
          %2048 = vmatpush1.bf16.xpose.msra.mxu0 0
          %2049 = vmatprep.subr.bf16.mxu0 0
          %2050 = vmatpush1.bf16.xpose.msra.mxu0 0
          %2051 = vmatprep.subr.bf16.mxu0 0
          %2052 = vmatpush1.bf16.xpose.msra.mxu0 0
          %2053 = vmatprep.subr.bf16.mxu0 0
          %2054 = vmatpush1.bf16.xpose.msra.mxu0 0
          %2055 = vmatprep.subr.bf16.mxu0 0
          %2056 = vmatpush1.bf16.xpose.msra.mxu0 0
          %2057 = vmatprep.subr.bf16.mxu0 0
          %2058 = vmatpush1.bf16.xpose.msra.mxu0 0
          %2059 = vmatprep.subr.bf16.mxu0 0
          %2060 = vmatpush1.bf16.xpose.msra.mxu0 0
          %2061 = vmatprep.subr.bf16.mxu0 0
          %2062 = vmatpush1.bf16.xpose.msra.mxu0 0
          %2063 = vmatprep.mubr.bf16.mxu0 0
          %2064 = vmatmul.mubr.bf16.gmra.mrb[0].mxu0 %v2029
          %v2065 = vpop.f32.mrb[0].mxu0
          %v2066 = vadd.f32 0.0, %v2065
          %v2067 = vpop.f32.mrb[0].mxu0
          %v2068 = vpop.f32.mrb[0].mxu0
          %v2069 = vpop.f32.mrb[0].mxu0
          %2070 = vdwg.mxu0
          %v2071 = vmul.f32 %v2066, 0.088388346
          %vm2072 = vcmask 64512
          %v2073 = vsel %vm2072, %v2071, -inf
          %2074 = vmax.xlane.f32.xlu0 %v2073
          %v2075 = vpop.xlane.xlu0 %2074
          %v2076 = vsub.f32 %v2071, %v2075
          %v2077 = vmul.f32 %v2076, 1.442695
          %v2078 = vpow.pop %v2077
          %v2079 = vsel %vm2072, %v2078, 0.0
          %2080 = vadd.xlane.f32.xlu0 %v2079
          %v2081 = vpop.xlane.xlu0 %2080
          %v2082 = vrcp.pop %v2081
          %v2083 = vmul.f32 %v2078, %v2082
          %v2084 = vpack.c.bf16 %v2083, %v2083
          %v2085 = vpack.c.bf16 %v1494, %v1494
          %v2087 = vsel %vm2072, %v2084, 0
          %vm2089 = vcmask 1043456
          %v2091 = vsel %vm2089, %v2085, 0
          %2093 = vmatprep.subr.bf16.mxu0 0
          %2094 = vmatpush1.bf16.msra.mxu0 %v2091
          %2095 = vmatprep.subr.bf16.mxu0 0
          %2096 = vmatpush1.bf16.msra.mxu0 0
          %2097 = vmatprep.subr.bf16.mxu0 0
          %2098 = vmatpush1.bf16.msra.mxu0 0
          %2099 = vmatprep.subr.bf16.mxu0 0
          %2100 = vmatpush1.bf16.msra.mxu0 0
          %2101 = vmatprep.subr.bf16.mxu0 0
          %2102 = vmatpush1.bf16.msra.mxu0 0
          %2103 = vmatprep.subr.bf16.mxu0 0
          %2104 = vmatpush1.bf16.msra.mxu0 0
          %2105 = vmatprep.subr.bf16.mxu0 0
          %2106 = vmatpush1.bf16.msra.mxu0 0
          %2107 = vmatprep.subr.bf16.mxu0 0
          %2108 = vmatpush1.bf16.msra.mxu0 0
          %2109 = vmatprep.subr.bf16.mxu0 0
          %2110 = vmatpush1.bf16.msra.mxu0 0
          %2111 = vmatprep.subr.bf16.mxu0 0
          %2112 = vmatpush1.bf16.msra.mxu0 0
          %2113 = vmatprep.subr.bf16.mxu0 0
          %2114 = vmatpush1.bf16.msra.mxu0 0
          %2115 = vmatprep.subr.bf16.mxu0 0
          %2116 = vmatpush1.bf16.msra.mxu0 0
          %2117 = vmatprep.subr.bf16.mxu0 0
          %2118 = vmatpush1.bf16.msra.mxu0 0
          %2119 = vmatprep.subr.bf16.mxu0 0
          %2120 = vmatpush1.bf16.msra.mxu0 0
          %2121 = vmatprep.subr.bf16.mxu0 0
          %2122 = vmatpush1.bf16.msra.mxu0 0
          %2123 = vmatprep.subr.bf16.mxu0 0
          %2124 = vmatpush1.bf16.msra.mxu0 0
          %2125 = vmatprep.mubr.bf16.mxu0 0
          %2126 = vmatmul.mubr.bf16.gmra.mrb[0].mxu0 %v2087
          %v2127 = vpop.f32.mrb[0].mxu0
          %v2128 = vadd.f32 0.0, %v2127
          %v2129 = vpop.f32.mrb[0].mxu0
          %v2130 = vpop.f32.mrb[0].mxu0
          %v2131 = vpop.f32.mrb[0].mxu0
          %2132 = vdwg.mxu0
          %v2133 = vpack.c.bf16 %v2027, %v2027
          %v2134 = vpack.c.bf16 %v1564, %v1564
          %2135 = vmatprep.subr.bf16.mxu0 0
          %2136 = vmatpush1.bf16.xpose.msra.mxu0 %v2134
          %2137 = vmatprep.subr.bf16.mxu0 0
          %2138 = vmatpush1.bf16.xpose.msra.mxu0 0
          %2139 = vmatprep.subr.bf16.mxu0 0
          %2140 = vmatpush1.bf16.xpose.msra.mxu0 0
          %2141 = vmatprep.subr.bf16.mxu0 0
          %2142 = vmatpush1.bf16.xpose.msra.mxu0 0
          %2143 = vmatprep.subr.bf16.mxu0 0
          %2144 = vmatpush1.bf16.xpose.msra.mxu0 0
          %2145 = vmatprep.subr.bf16.mxu0 0
          %2146 = vmatpush1.bf16.xpose.msra.mxu0 0
          %2147 = vmatprep.subr.bf16.mxu0 0
          %2148 = vmatpush1.bf16.xpose.msra.mxu0 0
          %2149 = vmatprep.subr.bf16.mxu0 0
          %2150 = vmatpush1.bf16.xpose.msra.mxu0 0
          %2151 = vmatprep.subr.bf16.mxu0 0
          %2152 = vmatpush1.bf16.xpose.msra.mxu0 0
          %2153 = vmatprep.subr.bf16.mxu0 0
          %2154 = vmatpush1.bf16.xpose.msra.mxu0 0
          %2155 = vmatprep.subr.bf16.mxu0 0
          %2156 = vmatpush1.bf16.xpose.msra.mxu0 0
          %2157 = vmatprep.subr.bf16.mxu0 0
          %2158 = vmatpush1.bf16.xpose.msra.mxu0 0
          %2159 = vmatprep.subr.bf16.mxu0 0
          %2160 = vmatpush1.bf16.xpose.msra.mxu0 0
          %2161 = vmatprep.subr.bf16.mxu0 0
          %2162 = vmatpush1.bf16.xpose.msra.mxu0 0
          %2163 = vmatprep.subr.bf16.mxu0 0
          %2164 = vmatpush1.bf16.xpose.msra.mxu0 0
          %2165 = vmatprep.subr.bf16.mxu0 0
          %2166 = vmatpush1.bf16.xpose.msra.mxu0 0
          %2167 = vmatprep.mubr.bf16.mxu0 0
          %2168 = vmatmul.mubr.bf16.gmra.mrb[0].mxu0 %v2133
          %v2169 = vpop.f32.mrb[0].mxu0
          %v2170 = vadd.f32 0.0, %v2169
          %v2171 = vpop.f32.mrb[0].mxu0
          %v2172 = vpop.f32.mrb[0].mxu0
          %v2173 = vpop.f32.mrb[0].mxu0
          %2174 = vdwg.mxu0
          %v2175 = vmul.f32 %v2170, 0.088388346
          %v2176 = vsel %vm2072, %v2175, -inf
          %2177 = vmax.xlane.f32.xlu0 %v2176
          %v2178 = vpop.xlane.xlu0 %2177
          %v2179 = vsub.f32 %v2175, %v2178
          %v2180 = vmul.f32 %v2179, 1.442695
          %v2181 = vpow.pop %v2180
          %v2182 = vsel %vm2072, %v2181, 0.0
          %2183 = vadd.xlane.f32.xlu0 %v2182
          %v2184 = vpop.xlane.xlu0 %2183
          %v2185 = vrcp.pop %v2184
          %v2186 = vmul.f32 %v2181, %v2185
          %v2187 = vpack.c.bf16 %v2186, %v2186
          %v2188 = vpack.c.bf16 %v1497, %v1497
          %v2190 = vsel %vm2072, %v2187, 0
          %v2193 = vsel %vm2089, %v2188, 0
          %2195 = vmatprep.subr.bf16.mxu0 0
          %2196 = vmatpush1.bf16.msra.mxu0 %v2193
          %2197 = vmatprep.subr.bf16.mxu0 0
          %2198 = vmatpush1.bf16.msra.mxu0 0
          %2199 = vmatprep.subr.bf16.mxu0 0
          %2200 = vmatpush1.bf16.msra.mxu0 0
          %2201 = vmatprep.subr.bf16.mxu0 0
          %2202 = vmatpush1.bf16.msra.mxu0 0
          %2203 = vmatprep.subr.bf16.mxu0 0
          %2204 = vmatpush1.bf16.msra.mxu0 0
          %2205 = vmatprep.subr.bf16.mxu0 0
          %2206 = vmatpush1.bf16.msra.mxu0 0
          %2207 = vmatprep.subr.bf16.mxu0 0
          %2208 = vmatpush1.bf16.msra.mxu0 0
          %2209 = vmatprep.subr.bf16.mxu0 0
          %2210 = vmatpush1.bf16.msra.mxu0 0
          %2211 = vmatprep.subr.bf16.mxu0 0
          %2212 = vmatpush1.bf16.msra.mxu0 0
          %2213 = vmatprep.subr.bf16.mxu0 0
          %2214 = vmatpush1.bf16.msra.mxu0 0
          %2215 = vmatprep.subr.bf16.mxu0 0
          %2216 = vmatpush1.bf16.msra.mxu0 0
          %2217 = vmatprep.subr.bf16.mxu0 0
          %2218 = vmatpush1.bf16.msra.mxu0 0
          %2219 = vmatprep.subr.bf16.mxu0 0
          %2220 = vmatpush1.bf16.msra.mxu0 0
          %2221 = vmatprep.subr.bf16.mxu0 0
          %2222 = vmatpush1.bf16.msra.mxu0 0
          %2223 = vmatprep.subr.bf16.mxu0 0
          %2224 = vmatpush1.bf16.msra.mxu0 0
          %2225 = vmatprep.subr.bf16.mxu0 0
          %2226 = vmatpush1.bf16.msra.mxu0 0
          %2227 = vmatprep.mubr.bf16.mxu0 0
          %2228 = vmatmul.mubr.bf16.gmra.mrb[0].mxu0 %v2190
          %v2229 = vpop.f32.mrb[0].mxu0
          %v2230 = vadd.f32 0.0, %v2229
          %v2231 = vpop.f32.mrb[0].mxu0
          %v2232 = vpop.f32.mrb[0].mxu0
          %v2233 = vpop.f32.mrb[0].mxu0
          %2234 = vdwg.mxu0
          %v2235 = vmul.f32 %v2128, %v2128
          %2236 = vadd.xlane.f32.xlu0 %v2235
          %v2237 = vpop.xlane.xlu0 %2236
          %v2238 = vmax.f32 %v2237, 1e-24
          %v2239 = vrsqrt.pop %v2238
          %v2240 = vmul.f32 %v2128, %v2239
          %v2241 = vmul.f32 %v2230, %v2230
          %2242 = vadd.xlane.f32.xlu0 %v2241
          %v2243 = vpop.xlane.xlu0 %2242
          %v2244 = vmax.f32 %v2243, 1e-24
          %v2245 = vrsqrt.pop %v2244
          %v2246 = vmul.f32 %v2230, %v2245
          %2247 = vmatprep.subr.mxu0 0.0
          %2248 = vmatpush1.xpose.msra.mxu0 %v2240
          %2249 = vmatprep.subr.mxu0 0.0
          %2250 = vmatpush1.xpose.msra.mxu0 0.0
          %2251 = vmatprep.subr.mxu0 0.0
          %2252 = vmatpush1.xpose.msra.mxu0 0.0
          %2253 = vmatprep.subr.mxu0 0.0
          %2254 = vmatpush1.xpose.msra.mxu0 0.0
          %2255 = vmatprep.subr.mxu0 0.0
          %2256 = vmatpush1.xpose.msra.mxu0 0.0
          %2257 = vmatprep.subr.mxu0 0.0
          %2258 = vmatpush1.xpose.msra.mxu0 0.0
          %2259 = vmatprep.subr.mxu0 0.0
          %2260 = vmatpush1.xpose.msra.mxu0 0.0
          %2261 = vmatprep.subr.mxu0 0.0
          %2262 = vmatpush1.xpose.msra.mxu0 0.0
          %2263 = vmatprep.subr.mxu0 0.0
          %2264 = vmatpush1.xpose.msra.mxu0 0.0
          %2265 = vmatprep.subr.mxu0 0.0
          %2266 = vmatpush1.xpose.msra.mxu0 0.0
          %2267 = vmatprep.subr.mxu0 0.0
          %2268 = vmatpush1.xpose.msra.mxu0 0.0
          %2269 = vmatprep.subr.mxu0 0.0
          %2270 = vmatpush1.xpose.msra.mxu0 0.0
          %2271 = vmatprep.subr.mxu0 0.0
          %2272 = vmatpush1.xpose.msra.mxu0 0.0
          %2273 = vmatprep.subr.mxu0 0.0
          %2274 = vmatpush1.xpose.msra.mxu0 0.0
          %2275 = vmatprep.subr.mxu0 0.0
          %2276 = vmatpush1.xpose.msra.mxu0 0.0
          %2277 = vmatprep.subr.mxu0 0.0
          %2278 = vmatpush1.xpose.msra.mxu0 0.0
          %2279 = vmatprep.subr.mxu0 0.0
          %2280 = vmatpush1.xpose.msra.mxu0 0.0
          %2281 = vmatprep.subr.mxu0 0.0
          %2282 = vmatpush1.xpose.msra.mxu0 0.0
          %2283 = vmatprep.subr.mxu0 0.0
          %2284 = vmatpush1.xpose.msra.mxu0 0.0
          %2285 = vmatprep.subr.mxu0 0.0
          %2286 = vmatpush1.xpose.msra.mxu0 0.0
          %2287 = vmatprep.subr.mxu0 0.0
          %2288 = vmatpush1.xpose.msra.mxu0 0.0
          %2289 = vmatprep.subr.mxu0 0.0
          %2290 = vmatpush1.xpose.msra.mxu0 0.0
          %2291 = vmatprep.subr.mxu0 0.0
          %2292 = vmatpush1.xpose.msra.mxu0 0.0
          %2293 = vmatprep.subr.mxu0 0.0
          %2294 = vmatpush1.xpose.msra.mxu0 0.0
          %2295 = vmatprep.subr.mxu0 0.0
          %2296 = vmatpush1.xpose.msra.mxu0 0.0
          %2297 = vmatprep.subr.mxu0 0.0
          %2298 = vmatpush1.xpose.msra.mxu0 0.0
          %2299 = vmatprep.subr.mxu0 0.0
          %2300 = vmatpush1.xpose.msra.mxu0 0.0
          %2301 = vmatprep.subr.mxu0 0.0
          %2302 = vmatpush1.xpose.msra.mxu0 0.0
          %2303 = vmatprep.subr.mxu0 0.0
          %2304 = vmatpush1.xpose.msra.mxu0 0.0
          %2305 = vmatprep.subr.mxu0 0.0
          %2306 = vmatpush1.xpose.msra.mxu0 0.0
          %2307 = vmatprep.subr.mxu0 0.0
          %2308 = vmatpush1.xpose.msra.mxu0 0.0
          %2309 = vmatprep.subr.mxu0 0.0
          %2310 = vmatpush1.xpose.msra.mxu0 0.0
          %2311 = vmatprep.mubr.f32.mxu0 0.0
          %2312 = vmatmul.mubr.f32.gmra.mrb[0].mxu0 %v2246
          %v2313 = vpop.f32.mrb[0].mxu0
          %v2314 = vadd.f32 0.0, %v2313
          %v2315 = vpop.f32.mrb[0].mxu0
          %2316 = vdwg.mxu0
          %v2317 = vrcp.pop 0.07
          %v2318 = vmul.f32 %v2314, %v2317
          %v2319 = vsel %vm2072, %v2318, -inf
          %2320 = vmax.xlane.f32.xlu0 %v2319
          %v2321 = vpop.xlane.xlu0 %2320
          %v2322 = vsub.f32 %v2318, %v2321
          %v2323 = vmul.f32 %v2322, 1.442695
          %v2324 = vpow.pop %v2323
          %v2325 = vsel %vm2072, %v2324, 0.0
          %2326 = vadd.xlane.f32.xlu0 %v2325
          %v2327 = vpop.xlane.xlu0 %2326
          %v2328 = vlog2.pop %v2327
          %v2329 = vmul.f32 %v2328, 0.6931472
          %v2330 = vadd.f32 %v2329, %v2321
          %v2331 = vlaneseq
          %v2332 = vshrl.u32 %v2331, 7
          %v2333 = vlaneseq
          %v2334 = vand.u32 %v2333, 127
          %vm2335 = vcmp.eq.s32.totalorder %v2332, %v2334
          %v2336 = vsel %vm2335, %v2318, 0.0
          %v2337 = vsel %vm2072, %v2336, 0.0
          %2338 = vadd.xlane.f32.xlu0 %v2337
          %v2339 = vpop.xlane.xlu0 %2338
          %v2340 = vsub.f32 %v2330, %v2339
          %vm2341 = vcmask 7168
          %v2342 = vsel %vm2341, %v2340, 0.0
          %2343 = vadd.xlane.f32.xlu0 %v2342
          %v2344 = vpop.xlane.xlu0 %2343
          %v2345 = vrot.slane %v2344, 4
          %v2346 = vadd.f32 %v2344, %v2345
          %v2347 = vrot.slane %v2346, 2
          %v2348 = vadd.f32 %v2346, %v2347
          %v2349 = vrot.slane %v2348, 1
          %v2350 = vadd.f32 %v2348, %v2349
          %s2351 = vtos %v2350
          %v2352 = vrcp.pop 8.0
          %s2353 = vtos %v2352
          %s2354 = smul.f32 %s2351, %s2353
          %s2355 = smul.f32 %s2354, 0.14
          %s2356 = scalar_lea.smem [#allocation12], 0
          %2357 = sst [smem:[%s2356]] %s2355
        $region84: #{moco_forward.1} parent=63 // pred_fallthru
          _
        %s2358 = sand.u32 %s317, 1
        %s2359 = scalar_lea.sflag [#allocation7], %s2358
        %s2360 = sand.u32 %s317, 1
        %s2361 = smul.addr %s2360, 512
        %s2362 = scalar_lea.vmem [#allocation13], %s2361
        // Predicated region
        $region85: #{moco_forward.1} parent=63 // pred_check
          %p2363 = pneg %p301
        $region86: #{moco_forward.1} parent=63 // pred_check_branch
          %2365 = sbr.rel (%p2363) target = $region88
        $region87: #{moco_forward.1} parent=63 // pred_region
          %s2367 = ssub.s32 16, 16
          %2368 = vsyncadd [#allocation8], %s2367
          %2371 = dma.smem_to_hbm [#allocation12], 16, %s11, [#allocation8]
        $region88: #{moco_forward.1} parent=63 // pred_fallthru
          _
        // Predicated region
        $region89: #{moco_forward.1} parent=63 // pred_check
          %p2372 = pneg %p327
        $region90: #{moco_forward.1} parent=63 // pred_check_branch
          %2374 = sbr.rel (%p2372) target = $region92
        $region91: #{moco_forward.1} parent=63 // pred_region
          %s2375 = smul.u32 32, %s37
          %s2377 = ssub.s32 8192, 8192
          %2378 = vsyncadd %s2359, %s2377
          %s2379 = smul.addr %s2375, 2
          %s2380 = smul.addr %s2379, 128
          %s2381 = scalar_lea.hbm %s12, %s2380
          %s2382 = sshll.u32 %s2362, 4
          %s2383 = int_to_ptr.vmem [resolvable:$true] %s2382
          %2388 = dma.vmem_to_hbm [thread:$0]  %s2383, 8192, %s2381, %s2359, 256, 256, 16
        $region92: #{moco_forward.1} parent=63 // pred_fallthru
          _
        // Predicated region
        $region93: #{moco_forward.1} parent=63 // pred_check
          %p2389 = pneg %p348
        $region94: #{moco_forward.1} parent=63 // pred_check_branch
          %2391 = sbr.rel (%p2389) target = $region96
        $region95: #{moco_forward.1} parent=63 // pred_region
          %s2393 = ssub.s32 4096, 4096
          %2394 = vsyncadd [#allocation15], %s2393
          %s2395 = sshll.u32 [#allocation14], 4
          %s2396 = int_to_ptr.vmem [resolvable:$true] %s2395
          %2401 = dma.vmem_to_hbm [thread:$0]  %s2396, 4096, %s13, [#allocation15], 128, 128, 8
        $region96: #{moco_forward.1} parent=63 // pred_fallthru
          _
        // Predicated region
        $region97: #{moco_forward.1} parent=63 // pred_check
          %p2402 = pneg %p301
        $region98: #{moco_forward.1} parent=63 // pred_check_branch
          %2404 = sbr.rel (%p2402) target = $region100
        $region99: #{moco_forward.1} parent=63 // pred_region
          %2405 = dma.done [#allocation8], 16
        $region100: #{moco_forward.1} parent=63 // pred_fallthru
          _
        // Predicated region
        $region101: #{moco_forward.1} parent=63 // pred_check
          %p2406 = pneg %p348
        $region102: #{moco_forward.1} parent=63 // pred_check_branch
          %2408 = sbr.rel (%p2406) target = $region104
        $region103: #{moco_forward.1} parent=63 // pred_region
          %2409 = dma.done [#allocation15], 4096
        $region104: #{moco_forward.1} parent=63 // pred_fallthru
          _
        %2410 = sfence
      $region64: #{moco_forward.1} parent=5 // pred_fallthru
        _
      %p2411 = scmp.le.s32.totalorder 2, %s32
      // Predicated region
      $region105: #{moco_forward.1} parent=5 // pred_check
        %p2412 = pneg %p2411
      $region106: #{moco_forward.1} parent=5 // pred_check_branch
        %2414 = sbr.rel (%p2412) target = $region108
      $region107: #{moco_forward.1} parent=5 // pred_region
        %s2415 = ssub.s32 %s32, 2
        // Predicated region
        $region109: #{moco_forward.1} parent=107 // pred_check
          %p2416 = pneg %p333
        $region110: #{moco_forward.1} parent=107 // pred_check_branch
          %2418 = sbr.rel (%p2416) target = $region112
        $region111: #{moco_forward.1} parent=107 // pred_region
          %s2419 = sand.u32 %s318, 1
          %s2420 = scalar_lea.sflag [#allocation7], %s2419
          %s2421 = sand.u32 %s318, 1
          %s2422 = smul.addr %s2421, 512
          %s2423 = scalar_lea.vmem [#allocation13], %s2422
          %2424 = dma.done %s2420, 8192
        $region112: #{moco_forward.1} parent=107 // pred_fallthru
          _
      $region108: #{moco_forward.1} parent=5 // pred_fallthru
        _
    $region6: #{moco_forward.1} parent=1 // loop_footer
      %s36 = sadd.s32 1, %s32
    $region7: #{moco_forward.1} parent=1 // loop_footer_branch
      %31 = sbr.rel target = $region3
    $region8: #{moco_forward.1} parent=1 // loop_exit
      _
    %2425 = vsyncpa [#allocation6], 1
    %s2426 = scalar_lea.sflag [#allocation6], 1
    %2427 = vsyncpa %s2426, 1
    %2428 = vsyncpa [#allocation10], 1
    %s2429 = scalar_lea.sflag [#allocation10], 1
    %2430 = vsyncpa %s2429, 1
    %2431 = vsyncpa [#allocation7], 1
    %s2432 = scalar_lea.sflag [#allocation7], 1
    %2433 = vsyncpa %s2432, 1
    %2434 = vsyncpa [#allocation15], 1
    %2435 = vsyncpa [#allocation8], 1
    %s2436 = scalar_lea.sflag [#allocation8], 1
    %2437 = vsyncpa %s2436, 1

</llo_original>
